<compile_context>
chip_gen: v7x
topology: tpu7x:2x2x1
jax: 0.10.0
libtpu: 0.0.40
codegen_flags: <defaults>
</compile_context>

<pallas_src>
import functools

import jax
import jax.numpy as jnp
from jax.experimental import pallas as pl
from jax.experimental.pallas import tpu as pltpu


def _round_up(x, m):
    return ((x + m - 1) // m) * m


def _default_act_dtype():
    """bf16 activations (bias-add / tanh) on chips with a bf16 VPU/EUP path
    (v6e / v7x); f32 on v5e and older where bf16 elementwise gains nothing."""
    try:
        kind = jax.devices()[0].device_kind.lower()
    except Exception:
        return jnp.float32
    if any(v in kind for v in ("v2", "v3", "v4", "v5")):
        return jnp.float32
    return jnp.bfloat16


def _pick_tile_b(batch, max_tile=256, min_steps=4):
    """Largest batch tile (multiple of 8, <= max_tile) giving >= min_steps grid
    steps (>= 2 per v7x TensorCore) with <= 12.5% zero-row padding waste;
    falls back to an 8-row tile for tiny / ragged batches."""
    for t in (256, 128, 64, 32, 16, 8):
        if t > max_tile:
            continue
        b_pad = _round_up(batch, t)
        if b_pad // t >= min_steps and (b_pad - batch) * 8 <= batch:
            return t
    return 8


def _encoder_kernel(x_ref, w1_ref, b1_ref, w2_ref, b2_ref, w3_ref, b3_ref,
                    w4_ref, b4_ref, o_ref, acc_ref, *, act_dtype):
    """Fused MLP: tanh(xW1+b1) -> tanh(.W2+b2) -> tanh(.W3+b3) -> .W4+b4.

    Layer 1 accumulates over the K grid axis into an f32 VMEM scratch; layers
    2-4 + the store run only on the final K step. MXU operands are bf16 with
    f32 accumulation; bias-add / tanh run in `act_dtype` (bf16 on v6e/v7x,
    f32 on v5e).
    """
    k = pl.program_id(1)
    cdt = w1_ref.dtype  # MXU compute dtype (bf16)

    @pl.when(k == 0)
    def _():
        acc_ref[...] = jnp.zeros_like(acc_ref)

    # x arrives in its producer dtype (f32); cast in-kernel (VPU) right before
    # the dot -- no separate HBM convert pass in the wrapper.
    acc_ref[...] += jnp.dot(x_ref[...].astype(cdt), w1_ref[...],
                            preferred_element_type=jnp.float32)

    @pl.when(k == pl.num_programs(1) - 1)
    def _():
        h = jnp.tanh((acc_ref[...] + b1_ref[...]).astype(act_dtype))
        h = jnp.tanh((jnp.dot(h.astype(cdt), w2_ref[...],
                              preferred_element_type=jnp.float32)
                      + b2_ref[...]).astype(act_dtype))
        h = jnp.tanh((jnp.dot(h.astype(cdt), w3_ref[...],
                              preferred_element_type=jnp.float32)
                      + b3_ref[...]).astype(act_dtype))
        z = jnp.dot(h.astype(cdt), w4_ref[...],
                    preferred_element_type=jnp.float32) + b4_ref[...]
        o_ref[...] = z.astype(o_ref.dtype)


def prepare_encoder_params(params, *, max_tile_k=512, lane_multiple=128,
                           compute_dtype=jnp.bfloat16):
    """One-time conversion of f32 (n_in, n_out) weights / (1, n_out) biases to
    the padded bf16 layout the kernel consumes. Hoisted out of the per-call
    path so repeated forwards do zero weight convert/pad HBM passes.

    Zero padding is exact: padded weight rows/cols and biases are 0 and
    tanh(0) = 0, so padded lanes never contaminate valid lanes.
    """
    (w1, b1), (w2, b2), (w3, b3), (w4, b4) = params
    n, hidden = w1.shape
    latent = w4.shape[1]

    tile_k = min(_round_up(n, lane_multiple), max_tile_k)  # multiple of 128
    n_p = _round_up(n, tile_k)
    h_p = _round_up(hidden, lane_multiple)

    def pad2(a, rows, cols, dtype):
        a = jnp.asarray(a, dtype)
        return jnp.pad(a, ((0, rows - a.shape[0]), (0, cols - a.shape[1])))

    return dict(
        n=n, n_p=n_p, tile_k=tile_k, hidden=hidden, h_p=h_p, latent=latent,
        compute_dtype=jnp.dtype(compute_dtype),
        w1=pad2(w1, n_p, h_p, compute_dtype),
        b1=pad2(b1, 1, h_p, jnp.float32),
        w2=pad2(w2, h_p, h_p, compute_dtype),
        b2=pad2(b2, 1, h_p, jnp.float32),
        w3=pad2(w3, h_p, h_p, compute_dtype),
        b3=pad2(b3, 1, h_p, jnp.float32),
        w4=pad2(w4, h_p, latent, compute_dtype),   # latent dim stays unpadded
        b4=pad2(b4, 1, latent, jnp.float32),
    )


def encoder_forward(images, prep, *, max_tile_b=256, act_dtype=None):
    """images: (B, C, H, W) float32 (NCHW, like PyTorch). Returns (B, latent)
    float32. `prep` comes from prepare_encoder_params."""
    if act_dtype is None:
        act_dtype = _default_act_dtype()

    B = images.shape[0]
    x = images.reshape(B, -1)              # same semantics as torch .view(B, -1)
    n, n_p, tile_k = prep["n"], prep["n_p"], prep["tile_k"]
    h_p, latent = prep["h_p"], prep["latent"]
    if x.shape[1] != n:
        raise ValueError(f"expected {n} input features, got {x.shape[1]}")

    tile_b = _pick_tile_b(B, max_tile=max_tile_b)
    B_p = _round_up(B, tile_b)
    # Only pad x when the batch / feature extents are ragged; no dtype cast
    # here (the kernel casts to bf16 right before the first dot).
    if (B_p, n_p) != (B, n):
        x = jnp.pad(x, ((0, B_p - B), (0, n_p - n)))

    grid = (B_p // tile_b, n_p // tile_k)   # K (reduction) axis last

    inputs = (x, prep["w1"], prep["b1"], prep["w2"], prep["b2"],
              prep["w3"], prep["b3"], prep["w4"], prep["b4"])

    flops = 2 * B_p * (n_p * h_p + 2 * h_p * h_p + h_p * latent)
    bytes_accessed = (sum(int(a.size) * a.dtype.itemsize for a in inputs)
                      + B_p * latent * 4)
    cost = pl.CostEstimate(flops=int(flops), transcendentals=int(3 * B_p * h_p),
                           bytes_accessed=int(bytes_accessed))

    kernel = functools.partial(_encoder_kernel, act_dtype=act_dtype)
    cbytes = prep["compute_dtype"].itemsize

    def run(weight_mode):
        # Grid-invariant weight / bias blocks: block index is always (0, 0).
        const = lambda shape: pl.BlockSpec(shape, lambda i, k: (0, 0),
                                           pipeline_mode=weight_mode)
        in_specs = [
            pl.BlockSpec((tile_b, tile_k), lambda i, k: (i, k)),   # x
            pl.BlockSpec((tile_k, h_p), lambda i, k: (k, 0)),      # W1 (streamed over K)
            const((1, h_p)),                                       # b1
            const((h_p, h_p)), const((1, h_p)),                    # W2, b2
            const((h_p, h_p)), const((1, h_p)),                    # W3, b3
            const((h_p, latent)), const((1, latent)),              # W4, b4
        ]
        out_spec = pl.BlockSpec((tile_b, latent), lambda i, k: (i, 0))

        nbuf = 1 if weight_mode is not None else 2
        vmem_est = (2 * tile_b * tile_k * x.dtype.itemsize           # x (2 bufs)
                    + 2 * tile_k * h_p * cbytes                      # W1 (2 bufs)
                    + nbuf * (2 * h_p * h_p + h_p * latent) * cbytes  # W2-W4
                    + nbuf * (3 * h_p + latent) * 4                  # biases
                    + 2 * tile_b * latent * 4                        # output
                    + tile_b * h_p * 4)                              # f32 accumulator
        vmem_limit = int(min(64 * 2**20, 2 * vmem_est + 8 * 2**20))

        return pl.pallas_call(
            kernel,
            out_shape=jax.ShapeDtypeStruct((B_p, latent), jnp.float32),
            grid_spec=pltpu.PrefetchScalarGridSpec(
                num_scalar_prefetch=0,
                grid=grid,
                in_specs=in_specs,
                out_specs=out_spec,
                scratch_shapes=[pltpu.VMEM((tile_b, h_p), jnp.float32)],
            ),
            compiler_params=pltpu.CompilerParams(
                dimension_semantics=("parallel", "arbitrary"),
                vmem_limit_bytes=vmem_limit),
            cost_estimate=cost,
        )(*inputs)

    # Single-buffer the grid-invariant weight blocks (halves their VMEM
    # footprint); gracefully fall back to default double-buffering if this JAX
    # build rejects buffer_count=1 on the main pallas_call pipeline.
    try:
        z = run(pl.Buffered(1))
    except Exception:
        z = run(None)

    return z[:B] if B_p != B else z


def init_encoder_params(key, n, latent_dim, hidden_dim=256, num_layers=3):
    """Deterministic init matching the PyTorch Encoder layer shapes.

    Linear(n_in, n_out): torch weight is (n_out, n_in); we store transposed
    (n_in, n_out) so the kernel does x @ W directly. Biases stored as (1, n_out).
    num_layers=3 -> linears: n->h, h->h, h->h, h->latent (3 Tanh stages).
    """
    dims = [n] + [hidden_dim] * num_layers + [latent_dim]
    params = []
    for i in range(len(dims) - 1):
        n_in, n_out = dims[i], dims[i + 1]
        key, kw, kb = jax.random.split(key, 3)
        bound = 1.0 / jnp.sqrt(n_in)
        w = jax.random.uniform(kw, (n_in, n_out), jnp.float32, -bound, bound)
        b = jax.random.uniform(kb, (1, n_out), jnp.float32, -bound, bound)
        params.append((w, b))
    return params


def encoder_reference(images, params, *, mxu_dtype=jnp.bfloat16,
                      act_dtype=jnp.float32):
    """Pure-JAX reference. (mxu_dtype=bf16, act_dtype as used on this chip)
    mirrors the kernel's mixed-precision schedule; (f32, f32) matches the
    original PyTorch math."""
    x = images.reshape(images.shape[0], -1)
    (w1, b1), (w2, b2), (w3, b3), (w4, b4) = params

    def lin(h, w, b):
        return jnp.dot(h.astype(mxu_dtype), w.astype(mxu_dtype),
                       preferred_element_type=jnp.float32) + b

    h = jnp.tanh(lin(x, w1, b1).astype(act_dtype))
    h = jnp.tanh(lin(h, w2, b2).astype(act_dtype))
    h = jnp.tanh(lin(h, w3, b3).astype(act_dtype))
    return lin(h, w4, b4)


if __name__ == "__main__":
    key = jax.random.PRNGKey(0)

    # Small shapes consistent with the module: images (B, C, H, W) -> n = C*H*W,
    # hidden_dim=256 (module default), num_layers=3, latent_dim=8.
    B, C, H, W = 64, 1, 16, 16
    n = C * H * W                       # 256
    hidden_dim, latent_dim, num_layers = 256, 8, 3

    key, k_img, k_img2 = jax.random.split(key, 3)
    images = jax.random.normal(k_img, (B, C, H, W), jnp.float32)
    params = init_encoder_params(key, n, latent_dim, hidden_dim, num_layers)

    prep = prepare_encoder_params(params)    # one-time weight pad/cast
    act_dtype = _default_act_dtype()

    z = jax.block_until_ready(encoder_forward(images, prep, act_dtype=act_dtype))
    assert z.shape == (B, latent_dim)

    # Precision-matched reference (bf16 MXU operands, f32 accumulation,
    # activations in the dtype the kernel uses on this chip).
    z_ref = encoder_reference(images, params, mxu_dtype=jnp.bfloat16,
                              act_dtype=act_dtype)
    assert jnp.allclose(z, z_ref, atol=2e-2, rtol=2e-2), \
        "mismatch vs mixed-precision reference"

    # Full-f32 reference (original PyTorch semantics) -- loose tol for bf16 MXU.
    z_f32 = encoder_reference(images, params, mxu_dtype=jnp.float32,
                              act_dtype=jnp.float32)
    assert jnp.allclose(z, z_f32, atol=6e-2, rtol=6e-2), "mismatch vs f32 reference"

    # Ragged batch exercises the adaptive batch tile + zero-row padding path.
    B2 = 50
    images2 = jax.random.normal(k_img2, (B2, C, H, W), jnp.float32)
    z2 = jax.block_until_ready(encoder_forward(images2, prep, act_dtype=act_dtype))
    z2_ref = encoder_reference(images2, params, mxu_dtype=jnp.bfloat16,
                               act_dtype=act_dtype)
    assert z2.shape == (B2, latent_dim)
    assert jnp.allclose(z2, z2_ref, atol=2e-2, rtol=2e-2), "ragged-batch mismatch"

    print("KERNEL_OK")
</pallas_src>

<mosaic_0001>
module attributes {stable_mosaic.version = 11 : i64} {
  func.func @_encoder_kernel(%arg0: i32, %arg1: i32, %arg2: memref<16x256xf32, #tpu.memory_space<vmem>>, %arg3: memref<256x256xbf16, #tpu.memory_space<vmem>>, %arg4: memref<1x256xf32, #tpu.memory_space<vmem>>, %arg5: memref<256x256xbf16, #tpu.memory_space<vmem>>, %arg6: memref<1x256xf32, #tpu.memory_space<vmem>>, %arg7: memref<256x256xbf16, #tpu.memory_space<vmem>>, %arg8: memref<1x256xf32, #tpu.memory_space<vmem>>, %arg9: memref<256x8xbf16, #tpu.memory_space<vmem>>, %arg10: memref<1x8xf32, #tpu.memory_space<vmem>>, %arg11: memref<16x8xf32, #tpu.memory_space<vmem>>, %arg12: memref<16x256xf32, #tpu.memory_space<vmem>>) attributes {dimension_semantics = [#tpu.dimension_semantics<parallel>, #tpu.dimension_semantics<arbitrary>], iteration_bounds = array<i64: 4, 1>, scalar_prefetch = 0 : i64, scratch_operands = 1 : i64, tpu.core_type = #tpu.core_type<tc>, window_params = [{transform_indices = @transform_0, window_bounds = array<i64: 16, 256>}, {transform_indices = @transform_1, window_bounds = array<i64: 256, 256>}, {pipeline_mode = #tpu.pipeline_mode<synchronous>, transform_indices = @transform_2, window_bounds = array<i64: 1, 256>}, {pipeline_mode = #tpu.pipeline_mode<synchronous>, transform_indices = @transform_3, window_bounds = array<i64: 256, 256>}, {pipeline_mode = #tpu.pipeline_mode<synchronous>, transform_indices = @transform_4, window_bounds = array<i64: 1, 256>}, {pipeline_mode = #tpu.pipeline_mode<synchronous>, transform_indices = @transform_5, window_bounds = array<i64: 256, 256>}, {pipeline_mode = #tpu.pipeline_mode<synchronous>, transform_indices = @transform_6, window_bounds = array<i64: 1, 256>}, {pipeline_mode = #tpu.pipeline_mode<synchronous>, transform_indices = @transform_7, window_bounds = array<i64: 256, 8>}, {pipeline_mode = #tpu.pipeline_mode<synchronous>, transform_indices = @transform_8, window_bounds = array<i64: 1, 8>}, {transform_indices = @transform_9, window_bounds = array<i64: 16, 8>}]} {
    %c0_i32 = arith.constant 0 : i32
    %0 = arith.cmpi eq, %arg1, %c0_i32 : i32
    %1 = arith.extui %0 : i1 to i32
    %c0_i32_0 = arith.constant 0 : i32
    %2 = arith.cmpi ne, %1, %c0_i32_0 : i32
    scf.if %2 {
      %cst_10 = arith.constant 0.000000e+00 : f32
      %13 = vector.broadcast %cst_10 : f32 to vector<16x256xf32>
      %c0_11 = arith.constant 0 : index
      %c0_12 = arith.constant 0 : index
      %14 = vector.load %arg12[%c0_11, %c0_12] : memref<16x256xf32, #tpu.memory_space<vmem>>, vector<16x256xf32>
      tpu.vector_store %arg12[%c0_11, %c0_12], %13 {strides = array<i32>} : memref<16x256xf32, #tpu.memory_space<vmem>>, vector<16x256xf32>,
    } else {
    }
    %c0 = arith.constant 0 : index
    %c0_1 = arith.constant 0 : index
    %3 = vector.load %arg12[%c0, %c0_1] : memref<16x256xf32, #tpu.memory_space<vmem>>, vector<16x256xf32>
    %c0_2 = arith.constant 0 : index
    %c0_3 = arith.constant 0 : index
    %4 = vector.load %arg2[%c0_2, %c0_3] : memref<16x256xf32, #tpu.memory_space<vmem>>, vector<16x256xf32>
    %5 = arith.truncf %4 : vector<16x256xf32> to vector<16x256xbf16>
    %c0_4 = arith.constant 0 : index
    %c0_5 = arith.constant 0 : index
    %6 = vector.load %arg3[%c0_4, %c0_5] : memref<256x256xbf16, #tpu.memory_space<vmem>>, vector<256x256xbf16>
    %cst = arith.constant dense<0.000000e+00> : vector<16x256xf32>
    %7 = tpu.matmul %5, %6, %cst {dimension_numbers = #tpu.dot_dimension_numbers<[1], [0], [0], [1], [0, 0, 1, 1], [], []>} : vector<16x256xbf16>, vector<256x256xbf16>, vector<16x256xf32> -> vector<16x256xf32>
    %8 = arith.addf %3, %7 : vector<16x256xf32>
    %c0_6 = arith.constant 0 : index
    %c0_7 = arith.constant 0 : index
    %9 = vector.load %arg12[%c0_6, %c0_7] : memref<16x256xf32, #tpu.memory_space<vmem>>, vector<16x256xf32>
    tpu.vector_store %arg12[%c0_6, %c0_7], %8 {strides = array<i32>} : memref<16x256xf32, #tpu.memory_space<vmem>>, vector<16x256xf32>,
    %c0_i32_8 = arith.constant 0 : i32
    %10 = arith.cmpi eq, %arg1, %c0_i32_8 : i32
    %11 = arith.extui %10 : i1 to i32
    %c0_i32_9 = arith.constant 0 : i32
    %12 = arith.cmpi ne, %11, %c0_i32_9 : i32
    scf.if %12 {
      %c0_10 = arith.constant 0 : index
      %c0_11 = arith.constant 0 : index
      %13 = vector.load %arg12[%c0_10, %c0_11] : memref<16x256xf32, #tpu.memory_space<vmem>>, vector<16x256xf32>
      %c0_12 = arith.constant 0 : index
      %c0_13 = arith.constant 0 : index
      %14 = vector.load %arg4[%c0_12, %c0_13] : memref<1x256xf32, #tpu.memory_space<vmem>>, vector<1x256xf32>
      %15 = vector.broadcast %14 : vector<1x256xf32> to vector<16x256xf32>
      %16 = arith.addf %13, %15 : vector<16x256xf32>
      %17 = arith.truncf %16 : vector<16x256xf32> to vector<16x256xbf16>
      %18 = math.tanh %17 : vector<16x256xbf16>
      %c0_14 = arith.constant 0 : index
      %c0_15 = arith.constant 0 : index
      %19 = vector.load %arg5[%c0_14, %c0_15] : memref<256x256xbf16, #tpu.memory_space<vmem>>, vector<256x256xbf16>
      %cst_16 = arith.constant dense<0.000000e+00> : vector<16x256xf32>
      %20 = tpu.matmul %18, %19, %cst_16 {dimension_numbers = #tpu.dot_dimension_numbers<[1], [0], [0], [1], [0, 0, 1, 1], [], []>} : vector<16x256xbf16>, vector<256x256xbf16>, vector<16x256xf32> -> vector<16x256xf32>
      %c0_17 = arith.constant 0 : index
      %c0_18 = arith.constant 0 : index
      %21 = vector.load %arg6[%c0_17, %c0_18] : memref<1x256xf32, #tpu.memory_space<vmem>>, vector<1x256xf32>
      %22 = vector.broadcast %21 : vector<1x256xf32> to vector<16x256xf32>
      %23 = arith.addf %20, %22 : vector<16x256xf32>
      %24 = arith.truncf %23 : vector<16x256xf32> to vector<16x256xbf16>
      %25 = math.tanh %24 : vector<16x256xbf16>
      %c0_19 = arith.constant 0 : index
      %c0_20 = arith.constant 0 : index
      %26 = vector.load %arg7[%c0_19, %c0_20] : memref<256x256xbf16, #tpu.memory_space<vmem>>, vector<256x256xbf16>
      %cst_21 = arith.constant dense<0.000000e+00> : vector<16x256xf32>
      %27 = tpu.matmul %25, %26, %cst_21 {dimension_numbers = #tpu.dot_dimension_numbers<[1], [0], [0], [1], [0, 0, 1, 1], [], []>} : vector<16x256xbf16>, vector<256x256xbf16>, vector<16x256xf32> -> vector<16x256xf32>
      %c0_22 = arith.constant 0 : index
      %c0_23 = arith.constant 0 : index
      %28 = vector.load %arg8[%c0_22, %c0_23] : memref<1x256xf32, #tpu.memory_space<vmem>>, vector<1x256xf32>
      %29 = vector.broadcast %28 : vector<1x256xf32> to vector<16x256xf32>
      %30 = arith.addf %27, %29 : vector<16x256xf32>
      %31 = arith.truncf %30 : vector<16x256xf32> to vector<16x256xbf16>
      %32 = math.tanh %31 : vector<16x256xbf16>
      %c0_24 = arith.constant 0 : index
      %c0_25 = arith.constant 0 : index
      %33 = vector.load %arg9[%c0_24, %c0_25] : memref<256x8xbf16, #tpu.memory_space<vmem>>, vector<256x8xbf16>
      %cst_26 = arith.constant dense<0.000000e+00> : vector<16x8xf32>
      %34 = tpu.matmul %32, %33, %cst_26 {dimension_numbers = #tpu.dot_dimension_numbers<[1], [0], [0], [1], [0, 0, 1, 1], [], []>} : vector<16x256xbf16>, vector<256x8xbf16>, vector<16x8xf32> -> vector<16x8xf32>
      %c0_27 = arith.constant 0 : index
      %c0_28 = arith.constant 0 : index
      %35 = vector.load %arg10[%c0_27, %c0_28] : memref<1x8xf32, #tpu.memory_space<vmem>>, vector<1x8xf32>
      %36 = vector.broadcast %35 : vector<1x8xf32> to vector<16x8xf32>
      %37 = arith.addf %34, %36 : vector<16x8xf32>
      %c0_29 = arith.constant 0 : index
      %c0_30 = arith.constant 0 : index
      %38 = vector.load %arg11[%c0_29, %c0_30] : memref<16x8xf32, #tpu.memory_space<vmem>>, vector<16x8xf32>
      tpu.vector_store %arg11[%c0_29, %c0_30], %37 {strides = array<i32>} : memref<16x8xf32, #tpu.memory_space<vmem>>, vector<16x8xf32>,
    } else {
    }
    return
  }
  func.func @transform_0(%arg0: i32, %arg1: i32) -> (i32, i32) {
    %c0_i32 = arith.constant 0 : i32
    return %arg0, %arg1 : i32, i32
  }
  func.func @transform_1(%arg0: i32, %arg1: i32) -> (i32, i32) {
    %c0_i32 = arith.constant 0 : i32
    %c0_i32_0 = arith.constant 0 : i32
    return %arg1, %c0_i32 : i32, i32
  }
  func.func @transform_2(%arg0: i32, %arg1: i32) -> (i32, i32) {
    %c0_i32 = arith.constant 0 : i32
    %c0_i32_0 = arith.constant 0 : i32
    %c0_i32_1 = arith.constant 0 : i32
    return %c0_i32, %c0_i32_0 : i32, i32
  }
  func.func @transform_3(%arg0: i32, %arg1: i32) -> (i32, i32) {
    %c0_i32 = arith.constant 0 : i32
    %c0_i32_0 = arith.constant 0 : i32
    %c0_i32_1 = arith.constant 0 : i32
    return %c0_i32, %c0_i32_0 : i32, i32
  }
  func.func @transform_4(%arg0: i32, %arg1: i32) -> (i32, i32) {
    %c0_i32 = arith.constant 0 : i32
    %c0_i32_0 = arith.constant 0 : i32
    %c0_i32_1 = arith.constant 0 : i32
    return %c0_i32, %c0_i32_0 : i32, i32
  }
  func.func @transform_5(%arg0: i32, %arg1: i32) -> (i32, i32) {
    %c0_i32 = arith.constant 0 : i32
    %c0_i32_0 = arith.constant 0 : i32
    %c0_i32_1 = arith.constant 0 : i32
    return %c0_i32, %c0_i32_0 : i32, i32
  }
  func.func @transform_6(%arg0: i32, %arg1: i32) -> (i32, i32) {
    %c0_i32 = arith.constant 0 : i32
    %c0_i32_0 = arith.constant 0 : i32
    %c0_i32_1 = arith.constant 0 : i32
    return %c0_i32, %c0_i32_0 : i32, i32
  }
  func.func @transform_7(%arg0: i32, %arg1: i32) -> (i32, i32) {
    %c0_i32 = arith.constant 0 : i32
    %c0_i32_0 = arith.constant 0 : i32
    %c0_i32_1 = arith.constant 0 : i32
    return %c0_i32, %c0_i32_0 : i32, i32
  }
  func.func @transform_8(%arg0: i32, %arg1: i32) -> (i32, i32) {
    %c0_i32 = arith.constant 0 : i32
    %c0_i32_0 = arith.constant 0 : i32
    %c0_i32_1 = arith.constant 0 : i32
    return %c0_i32, %c0_i32_0 : i32, i32
  }
  func.func @transform_9(%arg0: i32, %arg1: i32) -> (i32, i32) {
    %c0_i32 = arith.constant 0 : i32
    %c0_i32_0 = arith.constant 0 : i32
    return %arg0, %c0_i32 : i32, i32
  }
}

module attributes {stable_mosaic.version = 11 : i64} {
  func.func @_encoder_kernel(%arg0: i32, %arg1: i32, %arg2: memref<16x256xf32, #tpu.memory_space<vmem>>, %arg3: memref<256x256xbf16, #tpu.memory_space<vmem>>, %arg4: memref<1x256xf32, #tpu.memory_space<vmem>>, %arg5: memref<256x256xbf16, #tpu.memory_space<vmem>>, %arg6: memref<1x256xf32, #tpu.memory_space<vmem>>, %arg7: memref<256x256xbf16, #tpu.memory_space<vmem>>, %arg8: memref<1x256xf32, #tpu.memory_space<vmem>>, %arg9: memref<256x8xbf16, #tpu.memory_space<vmem>>, %arg10: memref<1x8xf32, #tpu.memory_space<vmem>>, %arg11: memref<16x8xf32, #tpu.memory_space<vmem>>, %arg12: memref<16x256xf32, #tpu.memory_space<vmem>>) attributes {dimension_semantics = [#tpu.dimension_semantics<parallel>, #tpu.dimension_semantics<arbitrary>], iteration_bounds = array<i64: 4, 1>, scalar_prefetch = 0 : i64, scratch_operands = 1 : i64, tpu.core_type = #tpu.core_type<tc>, window_params = [{transform_indices = @transform_0, window_bounds = array<i64: 16, 256>}, {transform_indices = @transform_1, window_bounds = array<i64: 256, 256>}, {pipeline_mode = #tpu.pipeline_mode<synchronous>, transform_indices = @transform_2, window_bounds = array<i64: 1, 256>}, {pipeline_mode = #tpu.pipeline_mode<synchronous>, transform_indices = @transform_3, window_bounds = array<i64: 256, 256>}, {pipeline_mode = #tpu.pipeline_mode<synchronous>, transform_indices = @transform_4, window_bounds = array<i64: 1, 256>}, {pipeline_mode = #tpu.pipeline_mode<synchronous>, transform_indices = @transform_5, window_bounds = array<i64: 256, 256>}, {pipeline_mode = #tpu.pipeline_mode<synchronous>, transform_indices = @transform_6, window_bounds = array<i64: 1, 256>}, {pipeline_mode = #tpu.pipeline_mode<synchronous>, transform_indices = @transform_7, window_bounds = array<i64: 256, 8>}, {pipeline_mode = #tpu.pipeline_mode<synchronous>, transform_indices = @transform_8, window_bounds = array<i64: 1, 8>}, {transform_indices = @transform_9, window_bounds = array<i64: 16, 8>}]} {
    %c0_i32 = arith.constant 0 : i32
    %0 = arith.cmpi eq, %arg1, %c0_i32 : i32
    %1 = arith.extui %0 : i1 to i32
    %c0_i32_0 = arith.constant 0 : i32
    %2 = arith.cmpi ne, %1, %c0_i32_0 : i32
    scf.if %2 {
      %cst_10 = arith.constant 0.000000e+00 : f32
      %13 = vector.broadcast %cst_10 : f32 to vector<16x256xf32>
      %c0_11 = arith.constant 0 : index
      %c0_12 = arith.constant 0 : index
      %14 = vector.load %arg12[%c0_11, %c0_12] : memref<16x256xf32, #tpu.memory_space<vmem>>, vector<16x256xf32>
      tpu.vector_store %arg12[%c0_11, %c0_12], %13 {strides = array<i32>} : memref<16x256xf32, #tpu.memory_space<vmem>>, vector<16x256xf32>,
    } else {
    }
    %c0 = arith.constant 0 : index
    %c0_1 = arith.constant 0 : index
    %3 = vector.load %arg12[%c0, %c0_1] : memref<16x256xf32, #tpu.memory_space<vmem>>, vector<16x256xf32>
    %c0_2 = arith.constant 0 : index
    %c0_3 = arith.constant 0 : index
    %4 = vector.load %arg2[%c0_2, %c0_3] : memref<16x256xf32, #tpu.memory_space<vmem>>, vector<16x256xf32>
    %5 = arith.truncf %4 : vector<16x256xf32> to vector<16x256xbf16>
    %c0_4 = arith.constant 0 : index
    %c0_5 = arith.constant 0 : index
    %6 = vector.load %arg3[%c0_4, %c0_5] : memref<256x256xbf16, #tpu.memory_space<vmem>>, vector<256x256xbf16>
    %cst = arith.constant dense<0.000000e+00> : vector<16x256xf32>
    %7 = tpu.matmul %5, %6, %cst {dimension_numbers = #tpu.dot_dimension_numbers<[1], [0], [0], [1], [0, 0, 1, 1], [], []>} : vector<16x256xbf16>, vector<256x256xbf16>, vector<16x256xf32> -> vector<16x256xf32>
    %8 = arith.addf %3, %7 : vector<16x256xf32>
    %c0_6 = arith.constant 0 : index
    %c0_7 = arith.constant 0 : index
    %9 = vector.load %arg12[%c0_6, %c0_7] : memref<16x256xf32, #tpu.memory_space<vmem>>, vector<16x256xf32>
    tpu.vector_store %arg12[%c0_6, %c0_7], %8 {strides = array<i32>} : memref<16x256xf32, #tpu.memory_space<vmem>>, vector<16x256xf32>,
    %c0_i32_8 = arith.constant 0 : i32
    %10 = arith.cmpi eq, %arg1, %c0_i32_8 : i32
    %11 = arith.extui %10 : i1 to i32
    %c0_i32_9 = arith.constant 0 : i32
    %12 = arith.cmpi ne, %11, %c0_i32_9 : i32
    scf.if %12 {
      %c0_10 = arith.constant 0 : index
      %c0_11 = arith.constant 0 : index
      %13 = vector.load %arg12[%c0_10, %c0_11] : memref<16x256xf32, #tpu.memory_space<vmem>>, vector<16x256xf32>
      %c0_12 = arith.constant 0 : index
      %c0_13 = arith.constant 0 : index
      %14 = vector.load %arg4[%c0_12, %c0_13] : memref<1x256xf32, #tpu.memory_space<vmem>>, vector<1x256xf32>
      %15 = vector.broadcast %14 : vector<1x256xf32> to vector<16x256xf32>
      %16 = arith.addf %13, %15 : vector<16x256xf32>
      %17 = arith.truncf %16 : vector<16x256xf32> to vector<16x256xbf16>
      %18 = math.tanh %17 : vector<16x256xbf16>
      %c0_14 = arith.constant 0 : index
      %c0_15 = arith.constant 0 : index
      %19 = vector.load %arg5[%c0_14, %c0_15] : memref<256x256xbf16, #tpu.memory_space<vmem>>, vector<256x256xbf16>
      %cst_16 = arith.constant dense<0.000000e+00> : vector<16x256xf32>
      %20 = tpu.matmul %18, %19, %cst_16 {dimension_numbers = #tpu.dot_dimension_numbers<[1], [0], [0], [1], [0, 0, 1, 1], [], []>} : vector<16x256xbf16>, vector<256x256xbf16>, vector<16x256xf32> -> vector<16x256xf32>
      %c0_17 = arith.constant 0 : index
      %c0_18 = arith.constant 0 : index
      %21 = vector.load %arg6[%c0_17, %c0_18] : memref<1x256xf32, #tpu.memory_space<vmem>>, vector<1x256xf32>
      %22 = vector.broadcast %21 : vector<1x256xf32> to vector<16x256xf32>
      %23 = arith.addf %20, %22 : vector<16x256xf32>
      %24 = arith.truncf %23 : vector<16x256xf32> to vector<16x256xbf16>
      %25 = math.tanh %24 : vector<16x256xbf16>
      %c0_19 = arith.constant 0 : index
      %c0_20 = arith.constant 0 : index
      %26 = vector.load %arg7[%c0_19, %c0_20] : memref<256x256xbf16, #tpu.memory_space<vmem>>, vector<256x256xbf16>
      %cst_21 = arith.constant dense<0.000000e+00> : vector<16x256xf32>
      %27 = tpu.matmul %25, %26, %cst_21 {dimension_numbers = #tpu.dot_dimension_numbers<[1], [0], [0], [1], [0, 0, 1, 1], [], []>} : vector<16x256xbf16>, vector<256x256xbf16>, vector<16x256xf32> -> vector<16x256xf32>
      %c0_22 = arith.constant 0 : index
      %c0_23 = arith.constant 0 : index
      %28 = vector.load %arg8[%c0_22, %c0_23] : memref<1x256xf32, #tpu.memory_space<vmem>>, vector<1x256xf32>
      %29 = vector.broadcast %28 : vector<1x256xf32> to vector<16x256xf32>
      %30 = arith.addf %27, %29 : vector<16x256xf32>
      %31 = arith.truncf %30 : vector<16x256xf32> to vector<16x256xbf16>
      %32 = math.tanh %31 : vector<16x256xbf16>
      %c0_24 = arith.constant 0 : index
      %c0_25 = arith.constant 0 : index
      %33 = vector.load %arg9[%c0_24, %c0_25] : memref<256x8xbf16, #tpu.memory_space<vmem>>, vector<256x8xbf16>
      %cst_26 = arith.constant dense<0.000000e+00> : vector<16x8xf32>
      %34 = tpu.matmul %32, %33, %cst_26 {dimension_numbers = #tpu.dot_dimension_numbers<[1], [0], [0], [1], [0, 0, 1, 1], [], []>} : vector<16x256xbf16>, vector<256x8xbf16>, vector<16x8xf32> -> vector<16x8xf32>
      %c0_27 = arith.constant 0 : index
      %c0_28 = arith.constant 0 : index
      %35 = vector.load %arg10[%c0_27, %c0_28] : memref<1x8xf32, #tpu.memory_space<vmem>>, vector<1x8xf32>
      %36 = vector.broadcast %35 : vector<1x8xf32> to vector<16x8xf32>
      %37 = arith.addf %34, %36 : vector<16x8xf32>
      %c0_29 = arith.constant 0 : index
      %c0_30 = arith.constant 0 : index
      %38 = vector.load %arg11[%c0_29, %c0_30] : memref<16x8xf32, #tpu.memory_space<vmem>>, vector<16x8xf32>
      tpu.vector_store %arg11[%c0_29, %c0_30], %37 {strides = array<i32>} : memref<16x8xf32, #tpu.memory_space<vmem>>, vector<16x8xf32>,
    } else {
    }
    return
  }
  func.func @transform_0(%arg0: i32, %arg1: i32) -> (i32, i32) {
    %c0_i32 = arith.constant 0 : i32
    return %arg0, %arg1 : i32, i32
  }
  func.func @transform_1(%arg0: i32, %arg1: i32) -> (i32, i32) {
    %c0_i32 = arith.constant 0 : i32
    %c0_i32_0 = arith.constant 0 : i32
    return %arg1, %c0_i32 : i32, i32
  }
  func.func @transform_2(%arg0: i32, %arg1: i32) -> (i32, i32) {
    %c0_i32 = arith.constant 0 : i32
    %c0_i32_0 = arith.constant 0 : i32
    %c0_i32_1 = arith.constant 0 : i32
    return %c0_i32, %c0_i32_0 : i32, i32
  }
  func.func @transform_3(%arg0: i32, %arg1: i32) -> (i32, i32) {
    %c0_i32 = arith.constant 0 : i32
    %c0_i32_0 = arith.constant 0 : i32
    %c0_i32_1 = arith.constant 0 : i32
    return %c0_i32, %c0_i32_0 : i32, i32
  }
  func.func @transform_4(%arg0: i32, %arg1: i32) -> (i32, i32) {
    %c0_i32 = arith.constant 0 : i32
    %c0_i32_0 = arith.constant 0 : i32
    %c0_i32_1 = arith.constant 0 : i32
    return %c0_i32, %c0_i32_0 : i32, i32
  }
  func.func @transform_5(%arg0: i32, %arg1: i32) -> (i32, i32) {
    %c0_i32 = arith.constant 0 : i32
    %c0_i32_0 = arith.constant 0 : i32
    %c0_i32_1 = arith.constant 0 : i32
    return %c0_i32, %c0_i32_0 : i32, i32
  }
  func.func @transform_6(%arg0: i32, %arg1: i32) -> (i32, i32) {
    %c0_i32 = arith.constant 0 : i32
    %c0_i32_0 = arith.constant 0 : i32
    %c0_i32_1 = arith.constant 0 : i32
    return %c0_i32, %c0_i32_0 : i32, i32
  }
  func.func @transform_7(%arg0: i32, %arg1: i32) -> (i32, i32) {
    %c0_i32 = arith.constant 0 : i32
    %c0_i32_0 = arith.constant 0 : i32
    %c0_i32_1 = arith.constant 0 : i32
    return %c0_i32, %c0_i32_0 : i32, i32
  }
  func.func @transform_8(%arg0: i32, %arg1: i32) -> (i32, i32) {
    %c0_i32 = arith.constant 0 : i32
    %c0_i32_0 = arith.constant 0 : i32
    %c0_i32_1 = arith.constant 0 : i32
    return %c0_i32, %c0_i32_0 : i32, i32
  }
  func.func @transform_9(%arg0: i32, %arg1: i32) -> (i32, i32) {
    %c0_i32 = arith.constant 0 : i32
    %c0_i32_0 = arith.constant 0 : i32
    return %arg0, %c0_i32 : i32, i32
  }
}

</mosaic_0001>

<llo_original>
// kernel: tpu_custom_call.1
$region0: #{tpu_custom_call.1}
  #allocation0 [shape = 'u32[]', space=smem, size = 0x4, offset = 0x4, fixed_abs, tag = 'smem constant byte address 0x4 - core index']
  #allocation1 [shape = 'u32[144,128]{1,0:T(1,128)}', space=vmem, size = 0x12000, scoped, tag = 'internal scratch']
  #allocation2 [shape = 'f32[16,256]{1,0:T(8,128)}', space=vmem, size = 0x4000, scoped, tag = 'scratch operand']
  %s0 = inlined_call_operand.vmem [shape: f32[64,256], index: 0, kind: input, shape index: {}]
  %s1 = inlined_call_operand.hbm [shape: bf16[256,256], index: 1, kind: input, shape index: {}]
  %s2 = inlined_call_operand.vmem [shape: f32[1,256], index: 2, kind: input, shape index: {}]
  %s3 = inlined_call_operand.hbm [shape: bf16[256,256], index: 3, kind: input, shape index: {}]
  %s4 = inlined_call_operand.vmem [shape: f32[1,256], index: 4, kind: input, shape index: {}]
  %s5 = inlined_call_operand.hbm [shape: bf16[256,256], index: 5, kind: input, shape index: {}]
  %s6 = inlined_call_operand.vmem [shape: f32[1,256], index: 6, kind: input, shape index: {}]
  %s7 = inlined_call_operand.vmem [shape: bf16[256,8], index: 7, kind: input, shape index: {}]
  %s8 = inlined_call_operand.vmem [shape: f32[1,8], index: 8, kind: input, shape index: {}]
  %s9 = inlined_call_operand.vmem [shape: f32[64,8], index: 9, kind: output, shape index: {}]
  %s10 = sld [smem:[#allocation0]]
  $region89: #{tpu_custom_call.1} parent=0
    _
  %s12 = ssub.s32 1, %s10
  %s13 = scalar_select 0, %s12, %s10
  $region1: #{tpu_custom_call.1} parent=0
    #allocation3 [shape = 'u8[131072]{0}', space=vmem, size = 0x20000, scoped, tag = 'input window, operand 1, single buffered']
    #allocation4 [shape = 's32[2]{0}', space=sflag, size = 0x8, scoped, tag = 'scoped memory for tpu_custom_call.1']
    #allocation5 [shape = 'u8[131072]{0}', space=vmem, size = 0x20000, scoped, tag = 'input window, operand 3, single buffered']
    #allocation6 [shape = 's32[1]{0}', space=sflag, size = 0x4, scoped, tag = 'scoped memory for tpu_custom_call.1']
    #allocation7 [shape = 'u8[131072]{0}', space=vmem, size = 0x20000, scoped, tag = 'input window, operand 5, single buffered']
    %14 = vsyncpa [#allocation4], 0
    %15 = vsyncpa [#allocation6], 0
    loop: start=0, step=1, limit=6
    $region2: #{tpu_custom_call.1} parent=1 // loop_pre_header
      _
    $region3: #{tpu_custom_call.1} parent=1 // loop_header
      %s17 = sphi 0, %s21
      %p18 = scmp.ge.s32.totalorder %s17, 6
      %s24 = sphi 0, %s36
      %s25 = sphi 0, %s32
      %s26 = sphi 0, %s24
      %s27 = sphi 0, %s25
      %s28 = sphi 0, %s26
      %s29 = sphi 0, %s27
      %s41 = sphi 0, %s43
      %s44 = sphi 0, %s41
      %s45 = sphi 0, %s44
      %s61 = sphi 0, %s45
      %s67 = sphi 0, %s69
      %s70 = sphi 0, %s67
      %s71 = sphi 0, %s70
      %s87 = sphi 0, %s71
      %s91 = sphi 0, %s91
      %s93 = sphi 0, %s91
      %s94 = sphi 0, %s93
      %s108 = sphi 0, %s94
      %s112 = sphi 0, %s112
      %s114 = sphi 0, %s112
      %s115 = sphi 0, %s114
      %s129 = sphi 0, %s115
      %s133 = sphi 0, %s133
      %s135 = sphi 0, %s133
      %s136 = sphi 0, %s135
      %s150 = sphi 0, %s136
      %s154 = sphi 0, %s154
      %s156 = sphi 0, %s154
      %s157 = sphi 0, %s156
      %s171 = sphi 0, %s157
      %s175 = sphi 0, %s175
      %s177 = sphi 0, %s175
      %s178 = sphi 0, %s177
      %s192 = sphi 0, %s178
      %s196 = sphi 0, %s196
      %s198 = sphi 0, %s196
      %s199 = sphi 0, %s198
      %s213 = sphi 0, %s199
      %s217 = sphi 0, %s217
      %s219 = sphi 0, %s217
      %s220 = sphi 0, %s219
      %s234 = sphi 0, %s220
      %s240 = sphi 0, %s242
      %s243 = sphi 0, %s240
      %s244 = sphi 0, %s243
      %s260 = sphi 0, %s244
    $region4: #{tpu_custom_call.1} parent=1 // loop_header_branch
      %20 = sbr.rel (%p18) target = $region8
    $region5: #{tpu_custom_call.1} parent=1 // loop_body
      %s22 = ssub.s32 %s17, 1
      %s23 = ssub.s32 %s17, 2
      %s30 = sadd.s32 1, %s25
      %p31 = scmp.ge.s32.totalorder %s30, 1
      %s32 = scalar_select %p31, 0, %s30
      %s33 = sadd.s32 1, %s24
      %s34 = scalar_select %p31, %s33, %s24
      %p35 = scmp.ge.s32.totalorder %s34, 4
      %s36 = scalar_select %p35, 0, %s34
      %s37 = ssub.s32 %s24, %s36
      %s38 = ssub.s32 %s25, %s32
      %s39 = sor.u32 %s37, %s38
      %p40 = scmp.eq.s32.totalorder %s39, 0
      %s42 = sadd.s32 %s41, 1
      %s43 = scalar_select %p40, %s41, %s42
      %p46 = pneg %p40
      %p47 = scmp.eq.s32.totalorder %s17, 3
      %p48 = por %p46, %p47
      %p49 = scmp.ne.s32.totalorder %s41, %s44
      %p50 = scmp.eq.s32.totalorder %s17, 0
      %p51 = por %p49, %p50
      %p52 = scmp.ne.s32.totalorder %s41, %s44
      %p53 = scmp.eq.s32.totalorder %s22, 3
      %p54 = por %p52, %p53
      %p55 = scmp.ne.s32.totalorder %s44, %s45
      %p56 = scmp.eq.s32.totalorder %s22, 0
      %p57 = por %p55, %p56
      %p58 = scmp.ne.s32.totalorder %s44, %s45
      %p59 = scmp.eq.s32.totalorder %s23, 3
      %p60 = por %p58, %p59
      %p62 = scmp.ne.s32.totalorder %s45, %s61
      %p63 = scmp.eq.s32.totalorder %s23, 0
      %p64 = por %p62, %p63
      %s65 = ssub.s32 %s25, %s32
      %p66 = scmp.eq.s32.totalorder %s65, 0
      %s68 = sadd.s32 %s67, 1
      %s69 = scalar_select %p66, %s67, %s68
      %p72 = pneg %p66
      %p73 = scmp.eq.s32.totalorder %s17, 3
      %p74 = por %p72, %p73
      %p75 = scmp.ne.s32.totalorder %s67, %s70
      %p76 = scmp.eq.s32.totalorder %s17, 0
      %p77 = por %p75, %p76
      %p78 = scmp.ne.s32.totalorder %s67, %s70
      %p79 = scmp.eq.s32.totalorder %s22, 3
      %p80 = por %p78, %p79
      %p81 = scmp.ne.s32.totalorder %s70, %s71
      %p82 = scmp.eq.s32.totalorder %s22, 0
      %p83 = por %p81, %p82
      %p84 = scmp.ne.s32.totalorder %s70, %s71
      %p85 = scmp.eq.s32.totalorder %s23, 3
      %p86 = por %p84, %p85
      %p88 = scmp.ne.s32.totalorder %s71, %s87
      %p89 = scmp.eq.s32.totalorder %s23, 0
      %p90 = por %p88, %p89
      %s92 = sadd.s32 %s91, 1
      %p95 = scmp.eq.s32.totalorder %s17, 3
      %p96 = scmp.ne.s32.totalorder %s91, %s93
      %p97 = scmp.eq.s32.totalorder %s17, 0
      %p98 = por %p96, %p97
      %p99 = scmp.ne.s32.totalorder %s91, %s93
      %p100 = scmp.eq.s32.totalorder %s22, 3
      %p101 = por %p99, %p100
      %p102 = scmp.ne.s32.totalorder %s93, %s94
      %p103 = scmp.eq.s32.totalorder %s22, 0
      %p104 = por %p102, %p103
      %p105 = scmp.ne.s32.totalorder %s93, %s94
      %p106 = scmp.eq.s32.totalorder %s23, 3
      %p107 = por %p105, %p106
      %p109 = scmp.ne.s32.totalorder %s94, %s108
      %p110 = scmp.eq.s32.totalorder %s23, 0
      %p111 = por %p109, %p110
      %s113 = sadd.s32 %s112, 1
      %p116 = scmp.eq.s32.totalorder %s17, 3
      %p117 = scmp.ne.s32.totalorder %s112, %s114
      %p118 = scmp.eq.s32.totalorder %s17, 0
      %p119 = por %p117, %p118
      %p120 = scmp.ne.s32.totalorder %s112, %s114
      %p121 = scmp.eq.s32.totalorder %s22, 3
      %p122 = por %p120, %p121
      %p123 = scmp.ne.s32.totalorder %s114, %s115
      %p124 = scmp.eq.s32.totalorder %s22, 0
      %p125 = por %p123, %p124
      %p126 = scmp.ne.s32.totalorder %s114, %s115
      %p127 = scmp.eq.s32.totalorder %s23, 3
      %p128 = por %p126, %p127
      %p130 = scmp.ne.s32.totalorder %s115, %s129
      %p131 = scmp.eq.s32.totalorder %s23, 0
      %p132 = por %p130, %p131
      %s134 = sadd.s32 %s133, 1
      %p137 = scmp.eq.s32.totalorder %s17, 3
      %p138 = scmp.ne.s32.totalorder %s133, %s135
      %p139 = scmp.eq.s32.totalorder %s17, 0
      %p140 = por %p138, %p139
      %p141 = scmp.ne.s32.totalorder %s133, %s135
      %p142 = scmp.eq.s32.totalorder %s22, 3
      %p143 = por %p141, %p142
      %p144 = scmp.ne.s32.totalorder %s135, %s136
      %p145 = scmp.eq.s32.totalorder %s22, 0
      %p146 = por %p144, %p145
      %p147 = scmp.ne.s32.totalorder %s135, %s136
      %p148 = scmp.eq.s32.totalorder %s23, 3
      %p149 = por %p147, %p148
      %p151 = scmp.ne.s32.totalorder %s136, %s150
      %p152 = scmp.eq.s32.totalorder %s23, 0
      %p153 = por %p151, %p152
      %s155 = sadd.s32 %s154, 1
      %p158 = scmp.eq.s32.totalorder %s17, 3
      %p159 = scmp.ne.s32.totalorder %s154, %s156
      %p160 = scmp.eq.s32.totalorder %s17, 0
      %p161 = por %p159, %p160
      %p162 = scmp.ne.s32.totalorder %s154, %s156
      %p163 = scmp.eq.s32.totalorder %s22, 3
      %p164 = por %p162, %p163
      %p165 = scmp.ne.s32.totalorder %s156, %s157
      %p166 = scmp.eq.s32.totalorder %s22, 0
      %p167 = por %p165, %p166
      %p168 = scmp.ne.s32.totalorder %s156, %s157
      %p169 = scmp.eq.s32.totalorder %s23, 3
      %p170 = por %p168, %p169
      %p172 = scmp.ne.s32.totalorder %s157, %s171
      %p173 = scmp.eq.s32.totalorder %s23, 0
      %p174 = por %p172, %p173
      %s176 = sadd.s32 %s175, 1
      %p179 = scmp.eq.s32.totalorder %s17, 3
      %p180 = scmp.ne.s32.totalorder %s175, %s177
      %p181 = scmp.eq.s32.totalorder %s17, 0
      %p182 = por %p180, %p181
      %p183 = scmp.ne.s32.totalorder %s175, %s177
      %p184 = scmp.eq.s32.totalorder %s22, 3
      %p185 = por %p183, %p184
      %p186 = scmp.ne.s32.totalorder %s177, %s178
      %p187 = scmp.eq.s32.totalorder %s22, 0
      %p188 = por %p186, %p187
      %p189 = scmp.ne.s32.totalorder %s177, %s178
      %p190 = scmp.eq.s32.totalorder %s23, 3
      %p191 = por %p189, %p190
      %p193 = scmp.ne.s32.totalorder %s178, %s192
      %p194 = scmp.eq.s32.totalorder %s23, 0
      %p195 = por %p193, %p194
      %s197 = sadd.s32 %s196, 1
      %p200 = scmp.eq.s32.totalorder %s17, 3
      %p201 = scmp.ne.s32.totalorder %s196, %s198
      %p202 = scmp.eq.s32.totalorder %s17, 0
      %p203 = por %p201, %p202
      %p204 = scmp.ne.s32.totalorder %s196, %s198
      %p205 = scmp.eq.s32.totalorder %s22, 3
      %p206 = por %p204, %p205
      %p207 = scmp.ne.s32.totalorder %s198, %s199
      %p208 = scmp.eq.s32.totalorder %s22, 0
      %p209 = por %p207, %p208
      %p210 = scmp.ne.s32.totalorder %s198, %s199
      %p211 = scmp.eq.s32.totalorder %s23, 3
      %p212 = por %p210, %p211
      %p214 = scmp.ne.s32.totalorder %s199, %s213
      %p215 = scmp.eq.s32.totalorder %s23, 0
      %p216 = por %p214, %p215
      %s218 = sadd.s32 %s217, 1
      %p221 = scmp.eq.s32.totalorder %s17, 3
      %p222 = scmp.ne.s32.totalorder %s217, %s219
      %p223 = scmp.eq.s32.totalorder %s17, 0
      %p224 = por %p222, %p223
      %p225 = scmp.ne.s32.totalorder %s217, %s219
      %p226 = scmp.eq.s32.totalorder %s22, 3
      %p227 = por %p225, %p226
      %p228 = scmp.ne.s32.totalorder %s219, %s220
      %p229 = scmp.eq.s32.totalorder %s22, 0
      %p230 = por %p228, %p229
      %p231 = scmp.ne.s32.totalorder %s219, %s220
      %p232 = scmp.eq.s32.totalorder %s23, 3
      %p233 = por %p231, %p232
      %p235 = scmp.ne.s32.totalorder %s220, %s234
      %p236 = scmp.eq.s32.totalorder %s23, 0
      %p237 = por %p235, %p236
      %s238 = ssub.s32 %s24, %s36
      %p239 = scmp.eq.s32.totalorder %s238, 0
      %s241 = sadd.s32 %s240, 1
      %s242 = scalar_select %p239, %s240, %s241
      %p245 = pneg %p239
      %p246 = scmp.eq.s32.totalorder %s17, 3
      %p247 = por %p245, %p246
      %p248 = scmp.ne.s32.totalorder %s240, %s243
      %p249 = scmp.eq.s32.totalorder %s17, 0
      %p250 = por %p248, %p249
      %p251 = scmp.ne.s32.totalorder %s240, %s243
      %p252 = scmp.eq.s32.totalorder %s22, 3
      %p253 = por %p251, %p252
      %p254 = scmp.ne.s32.totalorder %s243, %s244
      %p255 = scmp.eq.s32.totalorder %s22, 0
      %p256 = por %p254, %p255
      %p257 = scmp.ne.s32.totalorder %s243, %s244
      %p258 = scmp.eq.s32.totalorder %s23, 3
      %p259 = por %p257, %p258
      %p261 = scmp.ne.s32.totalorder %s244, %s260
      %p262 = scmp.eq.s32.totalorder %s23, 0
      %p263 = por %p261, %p262
      %p264 = scmp.le.s32.totalorder 1, %s17
      %p265 = scmp.lt.s32.totalorder %s17, 5
      %p266 = pnand %p264, %p265
      %p267 = pneg %p266
      // Predicated region
      $region9: #{tpu_custom_call.1} parent=5 // pred_check
        _
      $region10: #{tpu_custom_call.1} parent=5 // pred_check_branch
        %269 = sbr.rel (%p266) target = $region12
      $region11: #{tpu_custom_call.1} parent=5 // pred_region
        %s270 = ssub.s32 %s17, 1
        // Predicated region
        $region13: #{tpu_custom_call.1} parent=11 // pred_check
          %p271 = pneg %p83
        $region14: #{tpu_custom_call.1} parent=11 // pred_check_branch
          %273 = sbr.rel (%p271) target = $region16
        $region15: #{tpu_custom_call.1} parent=11 // pred_region
          %s274 = smul.u32 32, %s27
          %s276 = ssub.s32 4096, 4096
          %277 = vsyncadd [#allocation4], %s276
          %s278 = smul.addr %s274, 2
          %s279 = smul.addr %s278, 64
          %s280 = scalar_lea.hbm %s1, %s279
          %s281 = sshll.u32 [#allocation3], 4
          %s282 = int_to_ptr.vmem [resolvable:$true] %s281
          %287 = dma.hbm_to_vmem [thread:$0]  %s280, 4096, %s282, [#allocation4], 128, 128, 8
        $region16: #{tpu_custom_call.1} parent=11 // pred_fallthru
          _
        // Predicated region
        $region17: #{tpu_custom_call.1} parent=11 // pred_check
          %p288 = pneg %p104
        $region18: #{tpu_custom_call.1} parent=11 // pred_check_branch
          %290 = sbr.rel (%p288) target = $region20
        $region19: #{tpu_custom_call.1} parent=11 // pred_region
          _
        $region20: #{tpu_custom_call.1} parent=11 // pred_fallthru
          _
        // Predicated region
        $region21: #{tpu_custom_call.1} parent=11 // pred_check
          %p291 = pneg %p125
        $region22: #{tpu_custom_call.1} parent=11 // pred_check_branch
          %293 = sbr.rel (%p291) target = $region24
        $region23: #{tpu_custom_call.1} parent=11 // pred_region
          %s295 = ssub.s32 4096, 4096
          %296 = vsyncadd [#allocation6], %s295
          %s297 = sshll.u32 [#allocation5], 4
          %s298 = int_to_ptr.vmem [resolvable:$true] %s297
          %303 = dma.hbm_to_vmem [thread:$0]  %s3, 4096, %s298, [#allocation6], 128, 128, 8
        $region24: #{tpu_custom_call.1} parent=11 // pred_fallthru
          _
        // Predicated region
        $region25: #{tpu_custom_call.1} parent=11 // pred_check
          %p304 = pneg %p146
        $region26: #{tpu_custom_call.1} parent=11 // pred_check_branch
          %306 = sbr.rel (%p304) target = $region28
        $region27: #{tpu_custom_call.1} parent=11 // pred_region
          _
        $region28: #{tpu_custom_call.1} parent=11 // pred_fallthru
          _
        // Predicated region
        $region29: #{tpu_custom_call.1} parent=11 // pred_check
          %p307 = pneg %p167
        $region30: #{tpu_custom_call.1} parent=11 // pred_check_branch
          %309 = sbr.rel (%p307) target = $region32
        $region31: #{tpu_custom_call.1} parent=11 // pred_region
          %s311 = ssub.s32 4096, 4096
          %312 = vsyncadd [#allocation6], %s311
          %s313 = sshll.u32 [#allocation7], 4
          %s314 = int_to_ptr.vmem [resolvable:$true] %s313
          %319 = dma.hbm_to_vmem [thread:$0]  %s5, 4096, %s314, [#allocation6], 128, 128, 8
        $region32: #{tpu_custom_call.1} parent=11 // pred_fallthru
          _
        // Predicated region
        $region33: #{tpu_custom_call.1} parent=11 // pred_check
          %p320 = pneg %p188
        $region34: #{tpu_custom_call.1} parent=11 // pred_check_branch
          %322 = sbr.rel (%p320) target = $region36
        $region35: #{tpu_custom_call.1} parent=11 // pred_region
          _
        $region36: #{tpu_custom_call.1} parent=11 // pred_fallthru
          _
        // Predicated region
        $region37: #{tpu_custom_call.1} parent=11 // pred_check
          %p323 = pneg %p209
        $region38: #{tpu_custom_call.1} parent=11 // pred_check_branch
          %325 = sbr.rel (%p323) target = $region40
        $region39: #{tpu_custom_call.1} parent=11 // pred_region
          _
        $region40: #{tpu_custom_call.1} parent=11 // pred_fallthru
          _
        // Predicated region
        $region41: #{tpu_custom_call.1} parent=11 // pred_check
          %p326 = pneg %p230
        $region42: #{tpu_custom_call.1} parent=11 // pred_check_branch
          %328 = sbr.rel (%p326) target = $region44
        $region43: #{tpu_custom_call.1} parent=11 // pred_region
          _
        $region44: #{tpu_custom_call.1} parent=11 // pred_fallthru
          _
      $region12: #{tpu_custom_call.1} parent=5 // pred_fallthru
        _
      %p329 = scmp.lt.s32.totalorder %s17, 4
      // Predicated region
      $region45: #{tpu_custom_call.1} parent=5 // pred_check
        %p330 = pneg %p329
      $region46: #{tpu_custom_call.1} parent=5 // pred_check_branch
        %332 = sbr.rel (%p330) target = $region48
      $region47: #{tpu_custom_call.1} parent=5 // pred_region
        // Predicated region
        $region49: #{tpu_custom_call.1} parent=47 // pred_check
          %p333 = pneg %p51
        $region50: #{tpu_custom_call.1} parent=47 // pred_check_branch
          %335 = sbr.rel (%p333) target = $region52
        $region51: #{tpu_custom_call.1} parent=47 // pred_region
          %s336 = smul.u32 2, %s24
          %s337 = smul.u32 2, %s25
          %p338 = scmp.lt.s32.totalorder %s336, 7
          %s339 = scalar_select %p338, %s336, 7
          %p340 = scmp.lt.s32.totalorder %s337, 1
          %s341 = scalar_select %p340, %s337, 1
          %s342 = smul.addr %s339, 2
          %s343 = sadd.s32 %s341, %s342
          %s344 = smul.addr %s343, 8
          %s345 = scalar_lea.vmem %s0, %s344
          %s346 = smul.u32 2, %s24
          %s347 = smul.u32 2, %s25
        $region52: #{tpu_custom_call.1} parent=47 // pred_fallthru
          _
      $region48: #{tpu_custom_call.1} parent=5 // pred_fallthru
        _
      %p348 = scmp.le.s32.totalorder 1, %s17
      %p349 = scmp.lt.s32.totalorder %s17, 5
      %p350 = pnand %p348, %p349
      %p351 = pneg %p350
      // Predicated region
      $region53: #{tpu_custom_call.1} parent=5 // pred_check
        _
      $region54: #{tpu_custom_call.1} parent=5 // pred_check_branch
        %353 = sbr.rel (%p350) target = $region56
      $region55: #{tpu_custom_call.1} parent=5 // pred_region
        %s354 = ssub.s32 %s17, 1
        // Predicated region
        $region57: #{tpu_custom_call.1} parent=55 // pred_check
          %p355 = pneg %p83
        $region58: #{tpu_custom_call.1} parent=55 // pred_check_branch
          %357 = sbr.rel (%p355) target = $region60
        $region59: #{tpu_custom_call.1} parent=55 // pred_region
          %358 = dma.done [#allocation4], 4096
        $region60: #{tpu_custom_call.1} parent=55 // pred_fallthru
          _
        // Predicated region
        $region61: #{tpu_custom_call.1} parent=55 // pred_check
          %p359 = pneg %p125
        $region62: #{tpu_custom_call.1} parent=55 // pred_check_branch
          %361 = sbr.rel (%p359) target = $region64
        $region63: #{tpu_custom_call.1} parent=55 // pred_region
          %362 = dma.done [#allocation6], 4096
        $region64: #{tpu_custom_call.1} parent=55 // pred_fallthru
          _
        // Predicated region
        $region65: #{tpu_custom_call.1} parent=55 // pred_check
          %p363 = pneg %p167
        $region66: #{tpu_custom_call.1} parent=55 // pred_check_branch
          %365 = sbr.rel (%p363) target = $region68
        $region67: #{tpu_custom_call.1} parent=55 // pred_region
          %366 = dma.done [#allocation6], 4096
        $region68: #{tpu_custom_call.1} parent=55 // pred_fallthru
          _
        %s367 = smul.u32 2, %s26
        %s368 = smul.u32 2, %s27
        %p369 = scmp.lt.s32.totalorder %s367, 7
        %s370 = scalar_select %p369, %s367, 7
        %p371 = scmp.lt.s32.totalorder %s368, 1
        %s372 = scalar_select %p371, %s368, 1
        %s373 = smul.addr %s370, 2
        %s374 = sadd.s32 %s372, %s373
        %s375 = smul.addr %s374, 8
        %s376 = scalar_lea.vmem %s0, %s375
        %p377 = pneg %p57
        %p378 = pneg %p54
        %p379 = pneg %p83
        %p380 = pneg %p80
        %p381 = pneg %p104
        %p382 = pneg %p101
        %p383 = pneg %p125
        %p384 = pneg %p122
        %p385 = pneg %p146
        %p386 = pneg %p143
        %p387 = pneg %p167
        %p388 = pneg %p164
        %p389 = pneg %p188
        %p390 = pneg %p185
        %p391 = pneg %p209
        %p392 = pneg %p206
        %p393 = pneg %p230
        %p394 = pneg %p227
        %p395 = pneg %p256
        %p396 = pneg %p253
        %s397 = smul.u32 2, %s26
        %p398 = scmp.lt.s32.totalorder %s397, 7
        %s399 = scalar_select %p398, %s397, 7
        %s400 = smul.addr %s399, 8
        %s401 = scalar_lea.vmem %s9, %s400
        %s402 = smul.u32 2, %s26
        %s403 = smul.u32 2, %s27
        %p404 = scmp.lt.s32.totalorder %s402, 7
        %s405 = scalar_select %p404, %s402, 7
        %p406 = scmp.lt.s32.totalorder %s403, 1
        %s407 = scalar_select %p406, %s403, 1
        %s408 = smul.addr %s405, 2
        %s409 = sadd.s32 %s407, %s408
        %s410 = smul.addr %s409, 8
        %s411 = scalar_lea.vmem %s0, %s410
        %s412 = smul.u32 2, %s26
        %s413 = smul.u32 2, %s27
        %s414 = smul.u32 32, %s27
        %s415 = smul.u32 2, %s26
        %p416 = scmp.lt.s32.totalorder %s415, 7
        %s417 = scalar_select %p416, %s415, 7
        %s418 = smul.addr %s417, 8
        %s419 = scalar_lea.vmem %s9, %s418
        %s420 = smul.u32 2, %s26
        %p422 = scmp.eq.s32.totalorder %s27, 0
        // Predicated region
        $region69: #{tpu_custom_call.1} parent=55 // pred_check
          %p423 = pneg %p422
        $region70: #{tpu_custom_call.1} parent=55 // pred_check_branch
          %425 = sbr.rel (%p423) target = $region72
        $region71: #{tpu_custom_call.1} parent=55 // pred_region
          %426 = vst [vmem:[#allocation2] sm:$0xff] 0.0
          %427 = vst [vmem:[#allocation2 + $0x8] sm:$0xff] 0.0
          %428 = vst [vmem:[#allocation2 + $0x10] sm:$0xff] 0.0
          %429 = vst [vmem:[#allocation2 + $0x18] sm:$0xff] 0.0
        $region72: #{tpu_custom_call.1} parent=55 // pred_fallthru
          _
        %v430 = vld [vmem:[#allocation2] sm:$0xff]
        %v431 = vld [vmem:[#allocation2 + $0x8] sm:$0xff]
        %v432 = vld [vmem:[#allocation2 + $0x10] sm:$0xff]
        %v433 = vld [vmem:[#allocation2 + $0x18] sm:$0xff]
        %v434 = vld [vmem:[%s411] sm:$0xff]
        %v435 = vld [vmem:[%s411 + $0x8] sm:$0xff]
        %v436 = vld [vmem:[%s411 + $0x10] sm:$0xff]
        %v437 = vld [vmem:[%s411 + $0x18] sm:$0xff]
        %v438 = vpack.c.bf16 %v436, %v434
        %v439 = vpack.c.bf16 %v437, %v435
        %v440 = vld [vmem:[#allocation3] sm:$0xff]
        %v441 = vld [vmem:[#allocation3 + $0x8] sm:$0xff]
        %v442 = vld [vmem:[#allocation3 + $0x10] sm:$0xff]
        %v443 = vld [vmem:[#allocation3 + $0x18] sm:$0xff]
        %v444 = vld [vmem:[#allocation3 + $0x20] sm:$0xff]
        %v445 = vld [vmem:[#allocation3 + $0x28] sm:$0xff]
        %v446 = vld [vmem:[#allocation3 + $0x30] sm:$0xff]
        %v447 = vld [vmem:[#allocation3 + $0x38] sm:$0xff]
        %v448 = vld [vmem:[#allocation3 + $0x40] sm:$0xff]
        %v449 = vld [vmem:[#allocation3 + $0x48] sm:$0xff]
        %v450 = vld [vmem:[#allocation3 + $0x50] sm:$0xff]
        %v451 = vld [vmem:[#allocation3 + $0x58] sm:$0xff]
        %v452 = vld [vmem:[#allocation3 + $0x60] sm:$0xff]
        %v453 = vld [vmem:[#allocation3 + $0x68] sm:$0xff]
        %v454 = vld [vmem:[#allocation3 + $0x70] sm:$0xff]
        %v455 = vld [vmem:[#allocation3 + $0x78] sm:$0xff]
        %v456 = vld [vmem:[#allocation3 + $0x80] sm:$0xff]
        %v457 = vld [vmem:[#allocation3 + $0x88] sm:$0xff]
        %v458 = vld [vmem:[#allocation3 + $0x90] sm:$0xff]
        %v459 = vld [vmem:[#allocation3 + $0x98] sm:$0xff]
        %v460 = vld [vmem:[#allocation3 + $0xa0] sm:$0xff]
        %v461 = vld [vmem:[#allocation3 + $0xa8] sm:$0xff]
        %v462 = vld [vmem:[#allocation3 + $0xb0] sm:$0xff]
        %v463 = vld [vmem:[#allocation3 + $0xb8] sm:$0xff]
        %v464 = vld [vmem:[#allocation3 + $0xc0] sm:$0xff]
        %v465 = vld [vmem:[#allocation3 + $0xc8] sm:$0xff]
        %v466 = vld [vmem:[#allocation3 + $0xd0] sm:$0xff]
        %v467 = vld [vmem:[#allocation3 + $0xd8] sm:$0xff]
        %v468 = vld [vmem:[#allocation3 + $0xe0] sm:$0xff]
        %v469 = vld [vmem:[#allocation3 + $0xe8] sm:$0xff]
        %v470 = vld [vmem:[#allocation3 + $0xf0] sm:$0xff]
        %v471 = vld [vmem:[#allocation3 + $0xf8] sm:$0xff]
        %v504 = vunpack.c.l.b16 %v440
        %v505 = vunpack.c.h.b16 %v440
        %v506 = vunpack.c.l.b16 %v441
        %v507 = vunpack.c.h.b16 %v441
        %v508 = vunpack.c.l.b16 %v442
        %v509 = vunpack.c.h.b16 %v442
        %v510 = vunpack.c.l.b16 %v443
        %v511 = vunpack.c.h.b16 %v443
        %v512 = vunpack.c.l.b16 %v444
        %v513 = vunpack.c.h.b16 %v444
        %v514 = vunpack.c.l.b16 %v445
        %v515 = vunpack.c.h.b16 %v445
        %v516 = vunpack.c.l.b16 %v446
        %v517 = vunpack.c.h.b16 %v446
        %v518 = vunpack.c.l.b16 %v447
        %v519 = vunpack.c.h.b16 %v447
        %v520 = vunpack.c.l.b16 %v448
        %v521 = vunpack.c.h.b16 %v448
        %v522 = vunpack.c.l.b16 %v449
        %v523 = vunpack.c.h.b16 %v449
        %v524 = vunpack.c.l.b16 %v450
        %v525 = vunpack.c.h.b16 %v450
        %v526 = vunpack.c.l.b16 %v451
        %v527 = vunpack.c.h.b16 %v451
        %v528 = vunpack.c.l.b16 %v452
        %v529 = vunpack.c.h.b16 %v452
        %v530 = vunpack.c.l.b16 %v453
        %v531 = vunpack.c.h.b16 %v453
        %v532 = vunpack.c.l.b16 %v454
        %v533 = vunpack.c.h.b16 %v454
        %v534 = vunpack.c.l.b16 %v455
        %v535 = vunpack.c.h.b16 %v455
        %v536 = vunpack.c.l.b16 %v456
        %v537 = vunpack.c.h.b16 %v456
        %v538 = vunpack.c.l.b16 %v457
        %v539 = vunpack.c.h.b16 %v457
        %v540 = vunpack.c.l.b16 %v458
        %v541 = vunpack.c.h.b16 %v458
        %v542 = vunpack.c.l.b16 %v459
        %v543 = vunpack.c.h.b16 %v459
        %v544 = vunpack.c.l.b16 %v460
        %v545 = vunpack.c.h.b16 %v460
        %v546 = vunpack.c.l.b16 %v461
        %v547 = vunpack.c.h.b16 %v461
        %v548 = vunpack.c.l.b16 %v462
        %v549 = vunpack.c.h.b16 %v462
        %v550 = vunpack.c.l.b16 %v463
        %v551 = vunpack.c.h.b16 %v463
        %v552 = vunpack.c.l.b16 %v464
        %v553 = vunpack.c.h.b16 %v464
        %v554 = vunpack.c.l.b16 %v465
        %v555 = vunpack.c.h.b16 %v465
        %v556 = vunpack.c.l.b16 %v466
        %v557 = vunpack.c.h.b16 %v466
        %v558 = vunpack.c.l.b16 %v467
        %v559 = vunpack.c.h.b16 %v467
        %v560 = vunpack.c.l.b16 %v468
        %v561 = vunpack.c.h.b16 %v468
        %v562 = vunpack.c.l.b16 %v469
        %v563 = vunpack.c.h.b16 %v469
        %v564 = vunpack.c.l.b16 %v470
        %v565 = vunpack.c.h.b16 %v470
        %v566 = vunpack.c.l.b16 %v471
        %v567 = vunpack.c.h.b16 %v471
        %v568 = vpack.c.b16 %v506, %v504
        %v569 = vpack.c.b16 %v507, %v505
        %v570 = vpack.c.b16 %v510, %v508
        %v571 = vpack.c.b16 %v511, %v509
        %v572 = vpack.c.b16 %v514, %v512
        %v573 = vpack.c.b16 %v515, %v513
        %v574 = vpack.c.b16 %v518, %v516
        %v575 = vpack.c.b16 %v519, %v517
        %v576 = vpack.c.b16 %v522, %v520
        %v577 = vpack.c.b16 %v523, %v521
        %v578 = vpack.c.b16 %v526, %v524
        %v579 = vpack.c.b16 %v527, %v525
        %v580 = vpack.c.b16 %v530, %v528
        %v581 = vpack.c.b16 %v531, %v529
        %v582 = vpack.c.b16 %v534, %v532
        %v583 = vpack.c.b16 %v535, %v533
        %v584 = vpack.c.b16 %v538, %v536
        %v585 = vpack.c.b16 %v539, %v537
        %v586 = vpack.c.b16 %v542, %v540
        %v587 = vpack.c.b16 %v543, %v541
        %v588 = vpack.c.b16 %v546, %v544
        %v589 = vpack.c.b16 %v547, %v545
        %v590 = vpack.c.b16 %v550, %v548
        %v591 = vpack.c.b16 %v551, %v549
        %v592 = vpack.c.b16 %v554, %v552
        %v593 = vpack.c.b16 %v555, %v553
        %v594 = vpack.c.b16 %v558, %v556
        %v595 = vpack.c.b16 %v559, %v557
        %v596 = vpack.c.b16 %v562, %v560
        %v597 = vpack.c.b16 %v563, %v561
        %v598 = vpack.c.b16 %v566, %v564
        %v599 = vpack.c.b16 %v567, %v565
        %632 = vmatprep.subr.bf16.mxu0 %v569
        %633 = vmatpush1.bf16.msra.mxu0 %v568
        %634 = vmatprep.subr.bf16.mxu0 %v571
        %635 = vmatpush1.bf16.msra.mxu0 %v570
        %636 = vmatprep.subr.bf16.mxu0 %v573
        %637 = vmatpush1.bf16.msra.mxu0 %v572
        %638 = vmatprep.subr.bf16.mxu0 %v575
        %639 = vmatpush1.bf16.msra.mxu0 %v574
        %640 = vmatprep.subr.bf16.mxu0 %v577
        %641 = vmatpush1.bf16.msra.mxu0 %v576
        %642 = vmatprep.subr.bf16.mxu0 %v579
        %643 = vmatpush1.bf16.msra.mxu0 %v578
        %644 = vmatprep.subr.bf16.mxu0 %v581
        %645 = vmatpush1.bf16.msra.mxu0 %v580
        %646 = vmatprep.subr.bf16.mxu0 %v583
        %647 = vmatpush1.bf16.msra.mxu0 %v582
        %648 = vmatprep.subr.bf16.mxu0 %v585
        %649 = vmatpush1.bf16.msra.mxu0 %v584
        %650 = vmatprep.subr.bf16.mxu0 %v587
        %651 = vmatpush1.bf16.msra.mxu0 %v586
        %652 = vmatprep.subr.bf16.mxu0 %v589
        %653 = vmatpush1.bf16.msra.mxu0 %v588
        %654 = vmatprep.subr.bf16.mxu0 %v591
        %655 = vmatpush1.bf16.msra.mxu0 %v590
        %656 = vmatprep.subr.bf16.mxu0 %v593
        %657 = vmatpush1.bf16.msra.mxu0 %v592
        %658 = vmatprep.subr.bf16.mxu0 %v595
        %659 = vmatpush1.bf16.msra.mxu0 %v594
        %660 = vmatprep.subr.bf16.mxu0 %v597
        %661 = vmatpush1.bf16.msra.mxu0 %v596
        %662 = vmatprep.subr.bf16.mxu0 %v599
        %663 = vmatpush1.bf16.msra.mxu0 %v598
        %664 = vmatprep.mubr.bf16.mxu0 %v439
        %665 = vmatmul.mubr.bf16.gmra.mrb[0].mxu0 %v438
        %v666 = vpop.f32.mrb[0].mxu0
        %v667 = vadd.f32 0.0, %v666
        %v668 = vpop.f32.mrb[0].mxu0
        %v669 = vadd.f32 0.0, %v668
        %v670 = vpop.f32.mrb[0].mxu0
        %v671 = vadd.f32 0.0, %v670
        %v672 = vpop.f32.mrb[0].mxu0
        %v673 = vadd.f32 0.0, %v672
        %674 = vdwg.mxu0
        %v675 = vadd.f32 %v430, %v667
        %v676 = vadd.f32 %v431, %v669
        %v677 = vadd.f32 %v432, %v671
        %v678 = vadd.f32 %v433, %v673
        %679 = vst [vmem:[#allocation2] sm:$0xff] %v675
        %680 = vst [vmem:[#allocation2 + $0x8] sm:$0xff] %v676
        %681 = vst [vmem:[#allocation2 + $0x10] sm:$0xff] %v677
        %682 = vst [vmem:[#allocation2 + $0x18] sm:$0xff] %v678
        // Predicated region
        $region73: #{tpu_custom_call.1} parent=55 // pred_check
          %p683 = pneg %p422
        $region74: #{tpu_custom_call.1} parent=55 // pred_check_branch
          %685 = sbr.rel (%p683) target = $region76
        $region75: #{tpu_custom_call.1} parent=55 // pred_region
          %v686 = vld [vmem:[#allocation2] sm:$0xff]
          %v687 = vld [vmem:[#allocation2 + $0x8] sm:$0xff]
          %v688 = vld [vmem:[#allocation2 + $0x10] sm:$0xff]
          %v689 = vld [vmem:[#allocation2 + $0x18] sm:$0xff]
          %v690 = vld [vmem:[%s2] sm:$0x3]
          %v692 = vlaneseq
          %v693 = vshrl.u32 %v692, 7
          %v694 = vsub.s32 0, %v693
          %v695 = vrot.slane %v690, %v694
          %v696 = vlaneseq
          %v697 = vshrl.u32 %v696, 7
          %v698 = vsub.s32 1, %v697
          %v699 = vrot.slane %v690, %v698
          %v702 = vadd.f32 %v686, %v695
          %v703 = vadd.f32 %v687, %v699
          %v704 = vadd.f32 %v688, %v695
          %v705 = vadd.f32 %v689, %v699
          %v706 = vpack.c.bf16 %v704, %v702
          %v707 = vpack.c.bf16 %v705, %v703
          %v708 = vtanh.bf16.pop %v706
          %v709 = vtanh.bf16.pop %v707
          %v710 = vld [vmem:[#allocation5] sm:$0xff]
          %v711 = vld [vmem:[#allocation5 + $0x8] sm:$0xff]
          %v712 = vld [vmem:[#allocation5 + $0x10] sm:$0xff]
          %v713 = vld [vmem:[#allocation5 + $0x18] sm:$0xff]
          %v714 = vld [vmem:[#allocation5 + $0x20] sm:$0xff]
          %v715 = vld [vmem:[#allocation5 + $0x28] sm:$0xff]
          %v716 = vld [vmem:[#allocation5 + $0x30] sm:$0xff]
          %v717 = vld [vmem:[#allocation5 + $0x38] sm:$0xff]
          %v718 = vld [vmem:[#allocation5 + $0x40] sm:$0xff]
          %v719 = vld [vmem:[#allocation5 + $0x48] sm:$0xff]
          %v720 = vld [vmem:[#allocation5 + $0x50] sm:$0xff]
          %v721 = vld [vmem:[#allocation5 + $0x58] sm:$0xff]
          %v722 = vld [vmem:[#allocation5 + $0x60] sm:$0xff]
          %v723 = vld [vmem:[#allocation5 + $0x68] sm:$0xff]
          %v724 = vld [vmem:[#allocation5 + $0x70] sm:$0xff]
          %v725 = vld [vmem:[#allocation5 + $0x78] sm:$0xff]
          %v726 = vld [vmem:[#allocation5 + $0x80] sm:$0xff]
          %v727 = vld [vmem:[#allocation5 + $0x88] sm:$0xff]
          %v728 = vld [vmem:[#allocation5 + $0x90] sm:$0xff]
          %v729 = vld [vmem:[#allocation5 + $0x98] sm:$0xff]
          %v730 = vld [vmem:[#allocation5 + $0xa0] sm:$0xff]
          %v731 = vld [vmem:[#allocation5 + $0xa8] sm:$0xff]
          %v732 = vld [vmem:[#allocation5 + $0xb0] sm:$0xff]
          %v733 = vld [vmem:[#allocation5 + $0xb8] sm:$0xff]
          %v734 = vld [vmem:[#allocation5 + $0xc0] sm:$0xff]
          %v735 = vld [vmem:[#allocation5 + $0xc8] sm:$0xff]
          %v736 = vld [vmem:[#allocation5 + $0xd0] sm:$0xff]
          %v737 = vld [vmem:[#allocation5 + $0xd8] sm:$0xff]
          %v738 = vld [vmem:[#allocation5 + $0xe0] sm:$0xff]
          %v739 = vld [vmem:[#allocation5 + $0xe8] sm:$0xff]
          %v740 = vld [vmem:[#allocation5 + $0xf0] sm:$0xff]
          %v741 = vld [vmem:[#allocation5 + $0xf8] sm:$0xff]
          %v742 = vld [vmem:[%s4] sm:$0x3]
          %v744 = vlaneseq
          %v745 = vshrl.u32 %v744, 7
          %v746 = vsub.s32 0, %v745
          %v747 = vrot.slane %v742, %v746
          %v748 = vlaneseq
          %v749 = vshrl.u32 %v748, 7
          %v750 = vsub.s32 1, %v749
          %v751 = vrot.slane %v742, %v750
          %v786 = vunpack.c.l.b16 %v710
          %v787 = vunpack.c.h.b16 %v710
          %v788 = vunpack.c.l.b16 %v711
          %v789 = vunpack.c.h.b16 %v711
          %v790 = vunpack.c.l.b16 %v712
          %v791 = vunpack.c.h.b16 %v712
          %v792 = vunpack.c.l.b16 %v713
          %v793 = vunpack.c.h.b16 %v713
          %v794 = vunpack.c.l.b16 %v714
          %v795 = vunpack.c.h.b16 %v714
          %v796 = vunpack.c.l.b16 %v715
          %v797 = vunpack.c.h.b16 %v715
          %v798 = vunpack.c.l.b16 %v716
          %v799 = vunpack.c.h.b16 %v716
          %v800 = vunpack.c.l.b16 %v717
          %v801 = vunpack.c.h.b16 %v717
          %v802 = vunpack.c.l.b16 %v718
          %v803 = vunpack.c.h.b16 %v718
          %v804 = vunpack.c.l.b16 %v719
          %v805 = vunpack.c.h.b16 %v719
          %v806 = vunpack.c.l.b16 %v720
          %v807 = vunpack.c.h.b16 %v720
          %v808 = vunpack.c.l.b16 %v721
          %v809 = vunpack.c.h.b16 %v721
          %v810 = vunpack.c.l.b16 %v722
          %v811 = vunpack.c.h.b16 %v722
          %v812 = vunpack.c.l.b16 %v723
          %v813 = vunpack.c.h.b16 %v723
          %v814 = vunpack.c.l.b16 %v724
          %v815 = vunpack.c.h.b16 %v724
          %v816 = vunpack.c.l.b16 %v725
          %v817 = vunpack.c.h.b16 %v725
          %v818 = vunpack.c.l.b16 %v726
          %v819 = vunpack.c.h.b16 %v726
          %v820 = vunpack.c.l.b16 %v727
          %v821 = vunpack.c.h.b16 %v727
          %v822 = vunpack.c.l.b16 %v728
          %v823 = vunpack.c.h.b16 %v728
          %v824 = vunpack.c.l.b16 %v729
          %v825 = vunpack.c.h.b16 %v729
          %v826 = vunpack.c.l.b16 %v730
          %v827 = vunpack.c.h.b16 %v730
          %v828 = vunpack.c.l.b16 %v731
          %v829 = vunpack.c.h.b16 %v731
          %v830 = vunpack.c.l.b16 %v732
          %v831 = vunpack.c.h.b16 %v732
          %v832 = vunpack.c.l.b16 %v733
          %v833 = vunpack.c.h.b16 %v733
          %v834 = vunpack.c.l.b16 %v734
          %v835 = vunpack.c.h.b16 %v734
          %v836 = vunpack.c.l.b16 %v735
          %v837 = vunpack.c.h.b16 %v735
          %v838 = vunpack.c.l.b16 %v736
          %v839 = vunpack.c.h.b16 %v736
          %v840 = vunpack.c.l.b16 %v737
          %v841 = vunpack.c.h.b16 %v737
          %v842 = vunpack.c.l.b16 %v738
          %v843 = vunpack.c.h.b16 %v738
          %v844 = vunpack.c.l.b16 %v739
          %v845 = vunpack.c.h.b16 %v739
          %v846 = vunpack.c.l.b16 %v740
          %v847 = vunpack.c.h.b16 %v740
          %v848 = vunpack.c.l.b16 %v741
          %v849 = vunpack.c.h.b16 %v741
          %v850 = vpack.c.b16 %v788, %v786
          %v851 = vpack.c.b16 %v789, %v787
          %v852 = vpack.c.b16 %v792, %v790
          %v853 = vpack.c.b16 %v793, %v791
          %v854 = vpack.c.b16 %v796, %v794
          %v855 = vpack.c.b16 %v797, %v795
          %v856 = vpack.c.b16 %v800, %v798
          %v857 = vpack.c.b16 %v801, %v799
          %v858 = vpack.c.b16 %v804, %v802
          %v859 = vpack.c.b16 %v805, %v803
          %v860 = vpack.c.b16 %v808, %v806
          %v861 = vpack.c.b16 %v809, %v807
          %v862 = vpack.c.b16 %v812, %v810
          %v863 = vpack.c.b16 %v813, %v811
          %v864 = vpack.c.b16 %v816, %v814
          %v865 = vpack.c.b16 %v817, %v815
          %v866 = vpack.c.b16 %v820, %v818
          %v867 = vpack.c.b16 %v821, %v819
          %v868 = vpack.c.b16 %v824, %v822
          %v869 = vpack.c.b16 %v825, %v823
          %v870 = vpack.c.b16 %v828, %v826
          %v871 = vpack.c.b16 %v829, %v827
          %v872 = vpack.c.b16 %v832, %v830
          %v873 = vpack.c.b16 %v833, %v831
          %v874 = vpack.c.b16 %v836, %v834
          %v875 = vpack.c.b16 %v837, %v835
          %v876 = vpack.c.b16 %v840, %v838
          %v877 = vpack.c.b16 %v841, %v839
          %v878 = vpack.c.b16 %v844, %v842
          %v879 = vpack.c.b16 %v845, %v843
          %v880 = vpack.c.b16 %v848, %v846
          %v881 = vpack.c.b16 %v849, %v847
          %914 = vmatprep.subr.bf16.mxu0 %v851
          %915 = vmatpush1.bf16.msra.mxu0 %v850
          %916 = vmatprep.subr.bf16.mxu0 %v853
          %917 = vmatpush1.bf16.msra.mxu0 %v852
          %918 = vmatprep.subr.bf16.mxu0 %v855
          %919 = vmatpush1.bf16.msra.mxu0 %v854
          %920 = vmatprep.subr.bf16.mxu0 %v857
          %921 = vmatpush1.bf16.msra.mxu0 %v856
          %922 = vmatprep.subr.bf16.mxu0 %v859
          %923 = vmatpush1.bf16.msra.mxu0 %v858
          %924 = vmatprep.subr.bf16.mxu0 %v861
          %925 = vmatpush1.bf16.msra.mxu0 %v860
          %926 = vmatprep.subr.bf16.mxu0 %v863
          %927 = vmatpush1.bf16.msra.mxu0 %v862
          %928 = vmatprep.subr.bf16.mxu0 %v865
          %929 = vmatpush1.bf16.msra.mxu0 %v864
          %930 = vmatprep.subr.bf16.mxu0 %v867
          %931 = vmatpush1.bf16.msra.mxu0 %v866
          %932 = vmatprep.subr.bf16.mxu0 %v869
          %933 = vmatpush1.bf16.msra.mxu0 %v868
          %934 = vmatprep.subr.bf16.mxu0 %v871
          %935 = vmatpush1.bf16.msra.mxu0 %v870
          %936 = vmatprep.subr.bf16.mxu0 %v873
          %937 = vmatpush1.bf16.msra.mxu0 %v872
          %938 = vmatprep.subr.bf16.mxu0 %v875
          %939 = vmatpush1.bf16.msra.mxu0 %v874
          %940 = vmatprep.subr.bf16.mxu0 %v877
          %941 = vmatpush1.bf16.msra.mxu0 %v876
          %942 = vmatprep.subr.bf16.mxu0 %v879
          %943 = vmatpush1.bf16.msra.mxu0 %v878
          %944 = vmatprep.subr.bf16.mxu0 %v881
          %945 = vmatpush1.bf16.msra.mxu0 %v880
          %946 = vmatprep.mubr.bf16.mxu0 %v709
          %947 = vmatmul.mubr.bf16.gmra.mrb[0].mxu0 %v708
          %v948 = vpop.f32.mrb[0].mxu0
          %v949 = vadd.f32 %v747, %v948
          %v950 = vpop.f32.mrb[0].mxu0
          %v951 = vadd.f32 %v751, %v950
          %v952 = vpop.f32.mrb[0].mxu0
          %v953 = vadd.f32 %v747, %v952
          %v954 = vpop.f32.mrb[0].mxu0
          %v955 = vadd.f32 %v751, %v954
          %956 = vdwg.mxu0
          %v957 = vpack.c.bf16 %v953, %v949
          %v958 = vpack.c.bf16 %v955, %v951
          %v959 = vtanh.bf16.pop %v957
          %v960 = vtanh.bf16.pop %v958
          %v961 = vld [vmem:[#allocation7] sm:$0xff]
          %v962 = vld [vmem:[#allocation7 + $0x8] sm:$0xff]
          %v963 = vld [vmem:[#allocation7 + $0x10] sm:$0xff]
          %v964 = vld [vmem:[#allocation7 + $0x18] sm:$0xff]
          %v965 = vld [vmem:[#allocation7 + $0x20] sm:$0xff]
          %v966 = vld [vmem:[#allocation7 + $0x28] sm:$0xff]
          %v967 = vld [vmem:[#allocation7 + $0x30] sm:$0xff]
          %v968 = vld [vmem:[#allocation7 + $0x38] sm:$0xff]
          %v969 = vld [vmem:[#allocation7 + $0x40] sm:$0xff]
          %v970 = vld [vmem:[#allocation7 + $0x48] sm:$0xff]
          %v971 = vld [vmem:[#allocation7 + $0x50] sm:$0xff]
          %v972 = vld [vmem:[#allocation7 + $0x58] sm:$0xff]
          %v973 = vld [vmem:[#allocation7 + $0x60] sm:$0xff]
          %v974 = vld [vmem:[#allocation7 + $0x68] sm:$0xff]
          %v975 = vld [vmem:[#allocation7 + $0x70] sm:$0xff]
          %v976 = vld [vmem:[#allocation7 + $0x78] sm:$0xff]
          %v977 = vld [vmem:[#allocation7 + $0x80] sm:$0xff]
          %v978 = vld [vmem:[#allocation7 + $0x88] sm:$0xff]
          %v979 = vld [vmem:[#allocation7 + $0x90] sm:$0xff]
          %v980 = vld [vmem:[#allocation7 + $0x98] sm:$0xff]
          %v981 = vld [vmem:[#allocation7 + $0xa0] sm:$0xff]
          %v982 = vld [vmem:[#allocation7 + $0xa8] sm:$0xff]
          %v983 = vld [vmem:[#allocation7 + $0xb0] sm:$0xff]
          %v984 = vld [vmem:[#allocation7 + $0xb8] sm:$0xff]
          %v985 = vld [vmem:[#allocation7 + $0xc0] sm:$0xff]
          %v986 = vld [vmem:[#allocation7 + $0xc8] sm:$0xff]
          %v987 = vld [vmem:[#allocation7 + $0xd0] sm:$0xff]
          %v988 = vld [vmem:[#allocation7 + $0xd8] sm:$0xff]
          %v989 = vld [vmem:[#allocation7 + $0xe0] sm:$0xff]
          %v990 = vld [vmem:[#allocation7 + $0xe8] sm:$0xff]
          %v991 = vld [vmem:[#allocation7 + $0xf0] sm:$0xff]
          %v992 = vld [vmem:[#allocation7 + $0xf8] sm:$0xff]
          %v993 = vld [vmem:[%s6] sm:$0x3]
          %v995 = vlaneseq
          %v996 = vshrl.u32 %v995, 7
          %v997 = vsub.s32 0, %v996
          %v998 = vrot.slane %v993, %v997
          %v999 = vlaneseq
          %v1000 = vshrl.u32 %v999, 7
          %v1001 = vsub.s32 1, %v1000
          %v1002 = vrot.slane %v993, %v1001
          %v1037 = vunpack.c.l.b16 %v961
          %v1038 = vunpack.c.h.b16 %v961
          %v1039 = vunpack.c.l.b16 %v962
          %v1040 = vunpack.c.h.b16 %v962
          %v1041 = vunpack.c.l.b16 %v963
          %v1042 = vunpack.c.h.b16 %v963
          %v1043 = vunpack.c.l.b16 %v964
          %v1044 = vunpack.c.h.b16 %v964
          %v1045 = vunpack.c.l.b16 %v965
          %v1046 = vunpack.c.h.b16 %v965
          %v1047 = vunpack.c.l.b16 %v966
          %v1048 = vunpack.c.h.b16 %v966
          %v1049 = vunpack.c.l.b16 %v967
          %v1050 = vunpack.c.h.b16 %v967
          %v1051 = vunpack.c.l.b16 %v968
          %v1052 = vunpack.c.h.b16 %v968
          %v1053 = vunpack.c.l.b16 %v969
          %v1054 = vunpack.c.h.b16 %v969
          %v1055 = vunpack.c.l.b16 %v970
          %v1056 = vunpack.c.h.b16 %v970
          %v1057 = vunpack.c.l.b16 %v971
          %v1058 = vunpack.c.h.b16 %v971
          %v1059 = vunpack.c.l.b16 %v972
          %v1060 = vunpack.c.h.b16 %v972
          %v1061 = vunpack.c.l.b16 %v973
          %v1062 = vunpack.c.h.b16 %v973
          %v1063 = vunpack.c.l.b16 %v974
          %v1064 = vunpack.c.h.b16 %v974
          %v1065 = vunpack.c.l.b16 %v975
          %v1066 = vunpack.c.h.b16 %v975
          %v1067 = vunpack.c.l.b16 %v976
          %v1068 = vunpack.c.h.b16 %v976
          %v1069 = vunpack.c.l.b16 %v977
          %v1070 = vunpack.c.h.b16 %v977
          %v1071 = vunpack.c.l.b16 %v978
          %v1072 = vunpack.c.h.b16 %v978
          %v1073 = vunpack.c.l.b16 %v979
          %v1074 = vunpack.c.h.b16 %v979
          %v1075 = vunpack.c.l.b16 %v980
          %v1076 = vunpack.c.h.b16 %v980
          %v1077 = vunpack.c.l.b16 %v981
          %v1078 = vunpack.c.h.b16 %v981
          %v1079 = vunpack.c.l.b16 %v982
          %v1080 = vunpack.c.h.b16 %v982
          %v1081 = vunpack.c.l.b16 %v983
          %v1082 = vunpack.c.h.b16 %v983
          %v1083 = vunpack.c.l.b16 %v984
          %v1084 = vunpack.c.h.b16 %v984
          %v1085 = vunpack.c.l.b16 %v985
          %v1086 = vunpack.c.h.b16 %v985
          %v1087 = vunpack.c.l.b16 %v986
          %v1088 = vunpack.c.h.b16 %v986
          %v1089 = vunpack.c.l.b16 %v987
          %v1090 = vunpack.c.h.b16 %v987
          %v1091 = vunpack.c.l.b16 %v988
          %v1092 = vunpack.c.h.b16 %v988
          %v1093 = vunpack.c.l.b16 %v989
          %v1094 = vunpack.c.h.b16 %v989
          %v1095 = vunpack.c.l.b16 %v990
          %v1096 = vunpack.c.h.b16 %v990
          %v1097 = vunpack.c.l.b16 %v991
          %v1098 = vunpack.c.h.b16 %v991
          %v1099 = vunpack.c.l.b16 %v992
          %v1100 = vunpack.c.h.b16 %v992
          %v1101 = vpack.c.b16 %v1039, %v1037
          %v1102 = vpack.c.b16 %v1040, %v1038
          %v1103 = vpack.c.b16 %v1043, %v1041
          %v1104 = vpack.c.b16 %v1044, %v1042
          %v1105 = vpack.c.b16 %v1047, %v1045
          %v1106 = vpack.c.b16 %v1048, %v1046
          %v1107 = vpack.c.b16 %v1051, %v1049
          %v1108 = vpack.c.b16 %v1052, %v1050
          %v1109 = vpack.c.b16 %v1055, %v1053
          %v1110 = vpack.c.b16 %v1056, %v1054
          %v1111 = vpack.c.b16 %v1059, %v1057
          %v1112 = vpack.c.b16 %v1060, %v1058
          %v1113 = vpack.c.b16 %v1063, %v1061
          %v1114 = vpack.c.b16 %v1064, %v1062
          %v1115 = vpack.c.b16 %v1067, %v1065
          %v1116 = vpack.c.b16 %v1068, %v1066
          %v1117 = vpack.c.b16 %v1071, %v1069
          %v1118 = vpack.c.b16 %v1072, %v1070
          %v1119 = vpack.c.b16 %v1075, %v1073
          %v1120 = vpack.c.b16 %v1076, %v1074
          %v1121 = vpack.c.b16 %v1079, %v1077
          %v1122 = vpack.c.b16 %v1080, %v1078
          %v1123 = vpack.c.b16 %v1083, %v1081
          %v1124 = vpack.c.b16 %v1084, %v1082
          %v1125 = vpack.c.b16 %v1087, %v1085
          %v1126 = vpack.c.b16 %v1088, %v1086
          %v1127 = vpack.c.b16 %v1091, %v1089
          %v1128 = vpack.c.b16 %v1092, %v1090
          %v1129 = vpack.c.b16 %v1095, %v1093
          %v1130 = vpack.c.b16 %v1096, %v1094
          %v1131 = vpack.c.b16 %v1099, %v1097
          %v1132 = vpack.c.b16 %v1100, %v1098
          %1165 = vmatprep.subr.bf16.mxu0 %v1102
          %1166 = vmatpush1.bf16.msra.mxu0 %v1101
          %1167 = vmatprep.subr.bf16.mxu0 %v1104
          %1168 = vmatpush1.bf16.msra.mxu0 %v1103
          %1169 = vmatprep.subr.bf16.mxu0 %v1106
          %1170 = vmatpush1.bf16.msra.mxu0 %v1105
          %1171 = vmatprep.subr.bf16.mxu0 %v1108
          %1172 = vmatpush1.bf16.msra.mxu0 %v1107
          %1173 = vmatprep.subr.bf16.mxu0 %v1110
          %1174 = vmatpush1.bf16.msra.mxu0 %v1109
          %1175 = vmatprep.subr.bf16.mxu0 %v1112
          %1176 = vmatpush1.bf16.msra.mxu0 %v1111
          %1177 = vmatprep.subr.bf16.mxu0 %v1114
          %1178 = vmatpush1.bf16.msra.mxu0 %v1113
          %1179 = vmatprep.subr.bf16.mxu0 %v1116
          %1180 = vmatpush1.bf16.msra.mxu0 %v1115
          %1181 = vmatprep.subr.bf16.mxu0 %v1118
          %1182 = vmatpush1.bf16.msra.mxu0 %v1117
          %1183 = vmatprep.subr.bf16.mxu0 %v1120
          %1184 = vmatpush1.bf16.msra.mxu0 %v1119
          %1185 = vmatprep.subr.bf16.mxu0 %v1122
          %1186 = vmatpush1.bf16.msra.mxu0 %v1121
          %1187 = vmatprep.subr.bf16.mxu0 %v1124
          %1188 = vmatpush1.bf16.msra.mxu0 %v1123
          %1189 = vmatprep.subr.bf16.mxu0 %v1126
          %1190 = vmatpush1.bf16.msra.mxu0 %v1125
          %1191 = vmatprep.subr.bf16.mxu0 %v1128
          %1192 = vmatpush1.bf16.msra.mxu0 %v1127
          %1193 = vmatprep.subr.bf16.mxu0 %v1130
          %1194 = vmatpush1.bf16.msra.mxu0 %v1129
          %1195 = vmatprep.subr.bf16.mxu0 %v1132
          %1196 = vmatpush1.bf16.msra.mxu0 %v1131
          %1197 = vmatprep.mubr.bf16.mxu0 %v960
          %1198 = vmatmul.mubr.bf16.gmra.mrb[0].mxu0 %v959
          %v1199 = vpop.f32.mrb[0].mxu0
          %v1200 = vadd.f32 %v998, %v1199
          %v1201 = vpop.f32.mrb[0].mxu0
          %v1202 = vadd.f32 %v1002, %v1201
          %v1203 = vpop.f32.mrb[0].mxu0
          %v1204 = vadd.f32 %v998, %v1203
          %v1205 = vpop.f32.mrb[0].mxu0
          %v1206 = vadd.f32 %v1002, %v1205
          %1207 = vdwg.mxu0
          %v1208 = vpack.c.bf16 %v1204, %v1200
          %v1209 = vpack.c.bf16 %v1206, %v1202
          %v1210 = vtanh.bf16.pop %v1208
          %v1211 = vtanh.bf16.pop %v1209
          %v1212 = vld [vmem:[%s7] sm:$0xf]
          %v1213 = vld [vmem:[%s7 + $0x4] sm:$0xf]
          %v1214 = vld [vmem:[%s7 + $0x8] sm:$0xf]
          %v1215 = vld [vmem:[%s7 + $0xc] sm:$0xf]
          %v1216 = vld [vmem:[%s7 + $0x10] sm:$0xf]
          %v1217 = vld [vmem:[%s7 + $0x14] sm:$0xf]
          %v1218 = vld [vmem:[%s7 + $0x18] sm:$0xf]
          %v1219 = vld [vmem:[%s7 + $0x1c] sm:$0xf]
          %v1220 = vld [vmem:[%s7 + $0x20] sm:$0xf]
          %v1221 = vld [vmem:[%s7 + $0x24] sm:$0xf]
          %v1222 = vld [vmem:[%s7 + $0x28] sm:$0xf]
          %v1223 = vld [vmem:[%s7 + $0x2c] sm:$0xf]
          %v1224 = vld [vmem:[%s7 + $0x30] sm:$0xf]
          %v1225 = vld [vmem:[%s7 + $0x34] sm:$0xf]
          %v1226 = vld [vmem:[%s7 + $0x38] sm:$0xf]
          %v1227 = vld [vmem:[%s7 + $0x3c] sm:$0xf]
          %v1228 = vld [vmem:[%s7 + $0x40] sm:$0xf]
          %v1229 = vld [vmem:[%s7 + $0x44] sm:$0xf]
          %v1230 = vld [vmem:[%s7 + $0x48] sm:$0xf]
          %v1231 = vld [vmem:[%s7 + $0x4c] sm:$0xf]
          %v1232 = vld [vmem:[%s7 + $0x50] sm:$0xf]
          %v1233 = vld [vmem:[%s7 + $0x54] sm:$0xf]
          %v1234 = vld [vmem:[%s7 + $0x58] sm:$0xf]
          %v1235 = vld [vmem:[%s7 + $0x5c] sm:$0xf]
          %v1236 = vld [vmem:[%s7 + $0x60] sm:$0xf]
          %v1237 = vld [vmem:[%s7 + $0x64] sm:$0xf]
          %v1238 = vld [vmem:[%s7 + $0x68] sm:$0xf]
          %v1239 = vld [vmem:[%s7 + $0x6c] sm:$0xf]
          %v1240 = vld [vmem:[%s7 + $0x70] sm:$0xf]
          %v1241 = vld [vmem:[%s7 + $0x74] sm:$0xf]
          %v1242 = vld [vmem:[%s7 + $0x78] sm:$0xf]
          %v1243 = vld [vmem:[%s7 + $0x7c] sm:$0xf]
          %v1244 = vld [vmem:[%s8] sm:$0x1]
          %v1246 = vlaneseq
          %v1247 = vshrl.u32 %v1246, 7
          %v1248 = vsub.s32 0, %v1247
          %v1249 = vrot.slane %v1244, %v1248
          %v1283 = vunpack.c.l.b16 %v1212
          %v1284 = vunpack.c.l.b16 %v1213
          %v1285 = vunpack.c.l.b16 %v1214
          %v1286 = vunpack.c.l.b16 %v1215
          %v1287 = vunpack.c.l.b16 %v1216
          %v1288 = vunpack.c.l.b16 %v1217
          %v1289 = vunpack.c.l.b16 %v1218
          %v1290 = vunpack.c.l.b16 %v1219
          %v1291 = vunpack.c.l.b16 %v1220
          %v1292 = vunpack.c.l.b16 %v1221
          %v1293 = vunpack.c.l.b16 %v1222
          %v1294 = vunpack.c.l.b16 %v1223
          %v1295 = vunpack.c.l.b16 %v1224
          %v1296 = vunpack.c.l.b16 %v1225
          %v1297 = vunpack.c.l.b16 %v1226
          %v1298 = vunpack.c.l.b16 %v1227
          %v1299 = vunpack.c.l.b16 %v1228
          %v1300 = vunpack.c.l.b16 %v1229
          %v1301 = vunpack.c.l.b16 %v1230
          %v1302 = vunpack.c.l.b16 %v1231
          %v1303 = vunpack.c.l.b16 %v1232
          %v1304 = vunpack.c.l.b16 %v1233
          %v1305 = vunpack.c.l.b16 %v1234
          %v1306 = vunpack.c.l.b16 %v1235
          %v1307 = vunpack.c.l.b16 %v1236
          %v1308 = vunpack.c.l.b16 %v1237
          %v1309 = vunpack.c.l.b16 %v1238
          %v1310 = vunpack.c.l.b16 %v1239
          %v1311 = vunpack.c.l.b16 %v1240
          %v1312 = vunpack.c.l.b16 %v1241
          %v1313 = vunpack.c.l.b16 %v1242
          %v1314 = vunpack.c.l.b16 %v1243
          %v1315 = vpack.c.b16 %v1284, %v1283
          %v1316 = vpack.c.b16 %v1286, %v1285
          %v1317 = vpack.c.b16 %v1288, %v1287
          %v1318 = vpack.c.b16 %v1290, %v1289
          %v1319 = vpack.c.b16 %v1292, %v1291
          %v1320 = vpack.c.b16 %v1294, %v1293
          %v1321 = vpack.c.b16 %v1296, %v1295
          %v1322 = vpack.c.b16 %v1298, %v1297
          %v1323 = vpack.c.b16 %v1300, %v1299
          %v1324 = vpack.c.b16 %v1302, %v1301
          %v1325 = vpack.c.b16 %v1304, %v1303
          %v1326 = vpack.c.b16 %v1306, %v1305
          %v1327 = vpack.c.b16 %v1308, %v1307
          %v1328 = vpack.c.b16 %v1310, %v1309
          %v1329 = vpack.c.b16 %v1312, %v1311
          %v1330 = vpack.c.b16 %v1314, %v1313
          %1347 = vmatprep.subr.bf16.mxu0 0
          %1348 = vmatpush1.bf16.msra.mxu0 %v1315
          %1349 = vmatprep.subr.bf16.mxu0 0
          %1350 = vmatpush1.bf16.msra.mxu0 %v1316
          %1351 = vmatprep.subr.bf16.mxu0 0
          %1352 = vmatpush1.bf16.msra.mxu0 %v1317
          %1353 = vmatprep.subr.bf16.mxu0 0
          %1354 = vmatpush1.bf16.msra.mxu0 %v1318
          %1355 = vmatprep.subr.bf16.mxu0 0
          %1356 = vmatpush1.bf16.msra.mxu0 %v1319
          %1357 = vmatprep.subr.bf16.mxu0 0
          %1358 = vmatpush1.bf16.msra.mxu0 %v1320
          %1359 = vmatprep.subr.bf16.mxu0 0
          %1360 = vmatpush1.bf16.msra.mxu0 %v1321
          %1361 = vmatprep.subr.bf16.mxu0 0
          %1362 = vmatpush1.bf16.msra.mxu0 %v1322
          %1363 = vmatprep.subr.bf16.mxu0 0
          %1364 = vmatpush1.bf16.msra.mxu0 %v1323
          %1365 = vmatprep.subr.bf16.mxu0 0
          %1366 = vmatpush1.bf16.msra.mxu0 %v1324
          %1367 = vmatprep.subr.bf16.mxu0 0
          %1368 = vmatpush1.bf16.msra.mxu0 %v1325
          %1369 = vmatprep.subr.bf16.mxu0 0
          %1370 = vmatpush1.bf16.msra.mxu0 %v1326
          %1371 = vmatprep.subr.bf16.mxu0 0
          %1372 = vmatpush1.bf16.msra.mxu0 %v1327
          %1373 = vmatprep.subr.bf16.mxu0 0
          %1374 = vmatpush1.bf16.msra.mxu0 %v1328
          %1375 = vmatprep.subr.bf16.mxu0 0
          %1376 = vmatpush1.bf16.msra.mxu0 %v1329
          %1377 = vmatprep.subr.bf16.mxu0 0
          %1378 = vmatpush1.bf16.msra.mxu0 %v1330
          %1379 = vmatprep.mubr.bf16.mxu0 %v1211
          %1380 = vmatmul.mubr.bf16.gmra.mrb[0].mxu0 %v1210
          %v1381 = vpop.f32.mrb[0].mxu0
          %v1382 = vadd.f32 %v1249, %v1381
          %v1383 = vpop.f32.mrb[0].mxu0
          %v1384 = vpop.f32.mrb[0].mxu0
          %v1385 = vadd.f32 %v1249, %v1384
          %v1386 = vpop.f32.mrb[0].mxu0
          %1387 = vdwg.mxu0
          %vm1388 = vcmask 64512
          %1389 = vst.msk [vmem:[%s419] sm:$0xff] %vm1388, %v1382
          %1390 = vst.msk [vmem:[%s419 + $0x8] sm:$0xff] %vm1388, %v1385
        $region76: #{tpu_custom_call.1} parent=55 // pred_fallthru
          _
        %s1391 = smul.u32 2, %s26
        %p1392 = scmp.lt.s32.totalorder %s1391, 7
        %s1393 = scalar_select %p1392, %s1391, 7
        %s1394 = smul.addr %s1393, 8
        %s1395 = scalar_lea.vmem %s9, %s1394
        // Predicated region
        $region77: #{tpu_custom_call.1} parent=55 // pred_check
          %p1396 = pneg %p253
        $region78: #{tpu_custom_call.1} parent=55 // pred_check_branch
          %1398 = sbr.rel (%p1396) target = $region80
        $region79: #{tpu_custom_call.1} parent=55 // pred_region
          %s1399 = smul.u32 2, %s26
        $region80: #{tpu_custom_call.1} parent=55 // pred_fallthru
          _
      $region56: #{tpu_custom_call.1} parent=5 // pred_fallthru
        _
      %p1400 = scmp.le.s32.totalorder 2, %s17
      // Predicated region
      $region81: #{tpu_custom_call.1} parent=5 // pred_check
        %p1401 = pneg %p1400
      $region82: #{tpu_custom_call.1} parent=5 // pred_check_branch
        %1403 = sbr.rel (%p1401) target = $region84
      $region83: #{tpu_custom_call.1} parent=5 // pred_region
        %s1404 = ssub.s32 %s17, 2
        // Predicated region
        $region85: #{tpu_custom_call.1} parent=83 // pred_check
          %p1405 = pneg %p259
        $region86: #{tpu_custom_call.1} parent=83 // pred_check_branch
          %1407 = sbr.rel (%p1405) target = $region88
        $region87: #{tpu_custom_call.1} parent=83 // pred_region
          %s1408 = smul.u32 2, %s28
          %p1409 = scmp.lt.s32.totalorder %s1408, 7
          %s1410 = scalar_select %p1409, %s1408, 7
          %s1411 = smul.addr %s1410, 8
          %s1412 = scalar_lea.vmem %s9, %s1411
        $region88: #{tpu_custom_call.1} parent=83 // pred_fallthru
          _
      $region84: #{tpu_custom_call.1} parent=5 // pred_fallthru
        _
    $region6: #{tpu_custom_call.1} parent=1 // loop_footer
      %s21 = sadd.s32 1, %s17
    $region7: #{tpu_custom_call.1} parent=1 // loop_footer_branch
      %16 = sbr.rel target = $region3
    $region8: #{tpu_custom_call.1} parent=1 // loop_exit
      _
    %1413 = vsyncpa [#allocation4], 1
    %s1414 = scalar_lea.sflag [#allocation4], 1
    %1415 = vsyncpa %s1414, 1
    %1416 = vsyncpa [#allocation6], 1

// kernel: tpu_custom_call.1
$region0: #{tpu_custom_call.1}
  #allocation0 [shape = 'u32[]', space=smem, size = 0x4, offset = 0x4, fixed_abs, tag = 'smem constant byte address 0x4 - core index']
  #allocation1 [shape = 'u32[144,128]{1,0:T(1,128)}', space=vmem, size = 0x12000, scoped, tag = 'internal scratch']
  #allocation2 [shape = 'f32[16,256]{1,0:T(8,128)}', space=vmem, size = 0x4000, scoped, tag = 'scratch operand']
  %s0 = inlined_call_operand.vmem [shape: f32[64,256], index: 0, kind: input, shape index: {}]
  %s1 = inlined_call_operand.hbm [shape: bf16[256,256], index: 1, kind: input, shape index: {}]
  %s2 = inlined_call_operand.vmem [shape: f32[1,256], index: 2, kind: input, shape index: {}]
  %s3 = inlined_call_operand.hbm [shape: bf16[256,256], index: 3, kind: input, shape index: {}]
  %s4 = inlined_call_operand.vmem [shape: f32[1,256], index: 4, kind: input, shape index: {}]
  %s5 = inlined_call_operand.hbm [shape: bf16[256,256], index: 5, kind: input, shape index: {}]
  %s6 = inlined_call_operand.vmem [shape: f32[1,256], index: 6, kind: input, shape index: {}]
  %s7 = inlined_call_operand.vmem [shape: bf16[256,8], index: 7, kind: input, shape index: {}]
  %s8 = inlined_call_operand.vmem [shape: f32[1,8], index: 8, kind: input, shape index: {}]
  %s9 = inlined_call_operand.vmem [shape: f32[64,8], index: 9, kind: output, shape index: {}]
  %s10 = sld [smem:[#allocation0]]
  $region89: #{tpu_custom_call.1} parent=0
    _
  %s12 = ssub.s32 1, %s10
  %s13 = scalar_select 0, %s12, %s10
  $region1: #{tpu_custom_call.1} parent=0
    #allocation3 [shape = 'u8[131072]{0}', space=vmem, size = 0x20000, scoped, tag = 'input window, operand 1, single buffered']
    #allocation4 [shape = 's32[2]{0}', space=sflag, size = 0x8, scoped, tag = 'scoped memory for tpu_custom_call.1']
    #allocation5 [shape = 'u8[131072]{0}', space=vmem, size = 0x20000, scoped, tag = 'input window, operand 3, single buffered']
    #allocation6 [shape = 's32[1]{0}', space=sflag, size = 0x4, scoped, tag = 'scoped memory for tpu_custom_call.1']
    #allocation7 [shape = 'u8[131072]{0}', space=vmem, size = 0x20000, scoped, tag = 'input window, operand 5, single buffered']
    %14 = vsyncpa [#allocation4], 0
    %15 = vsyncpa [#allocation6], 0
    loop: start=0, step=1, limit=6
    $region2: #{tpu_custom_call.1} parent=1 // loop_pre_header
      _
    $region3: #{tpu_custom_call.1} parent=1 // loop_header
      %s17 = sphi 0, %s21
      %p18 = scmp.ge.s32.totalorder %s17, 6
      %s24 = sphi 0, %s36
      %s25 = sphi 0, %s32
      %s26 = sphi 0, %s24
      %s27 = sphi 0, %s25
      %s28 = sphi 0, %s26
      %s29 = sphi 0, %s27
      %s41 = sphi 0, %s43
      %s44 = sphi 0, %s41
      %s45 = sphi 0, %s44
      %s61 = sphi 0, %s45
      %s67 = sphi 0, %s69
      %s70 = sphi 0, %s67
      %s71 = sphi 0, %s70
      %s87 = sphi 0, %s71
      %s91 = sphi 0, %s91
      %s93 = sphi 0, %s91
      %s94 = sphi 0, %s93
      %s108 = sphi 0, %s94
      %s112 = sphi 0, %s112
      %s114 = sphi 0, %s112
      %s115 = sphi 0, %s114
      %s129 = sphi 0, %s115
      %s133 = sphi 0, %s133
      %s135 = sphi 0, %s133
      %s136 = sphi 0, %s135
      %s150 = sphi 0, %s136
      %s154 = sphi 0, %s154
      %s156 = sphi 0, %s154
      %s157 = sphi 0, %s156
      %s171 = sphi 0, %s157
      %s175 = sphi 0, %s175
      %s177 = sphi 0, %s175
      %s178 = sphi 0, %s177
      %s192 = sphi 0, %s178
      %s196 = sphi 0, %s196
      %s198 = sphi 0, %s196
      %s199 = sphi 0, %s198
      %s213 = sphi 0, %s199
      %s217 = sphi 0, %s217
      %s219 = sphi 0, %s217
      %s220 = sphi 0, %s219
      %s234 = sphi 0, %s220
      %s240 = sphi 0, %s242
      %s243 = sphi 0, %s240
      %s244 = sphi 0, %s243
      %s260 = sphi 0, %s244
    $region4: #{tpu_custom_call.1} parent=1 // loop_header_branch
      %20 = sbr.rel (%p18) target = $region8
    $region5: #{tpu_custom_call.1} parent=1 // loop_body
      %s22 = ssub.s32 %s17, 1
      %s23 = ssub.s32 %s17, 2
      %s30 = sadd.s32 1, %s25
      %p31 = scmp.ge.s32.totalorder %s30, 1
      %s32 = scalar_select %p31, 0, %s30
      %s33 = sadd.s32 1, %s24
      %s34 = scalar_select %p31, %s33, %s24
      %p35 = scmp.ge.s32.totalorder %s34, 4
      %s36 = scalar_select %p35, 0, %s34
      %s37 = ssub.s32 %s24, %s36
      %s38 = ssub.s32 %s25, %s32
      %s39 = sor.u32 %s37, %s38
      %p40 = scmp.eq.s32.totalorder %s39, 0
      %s42 = sadd.s32 %s41, 1
      %s43 = scalar_select %p40, %s41, %s42
      %p46 = pneg %p40
      %p47 = scmp.eq.s32.totalorder %s17, 3
      %p48 = por %p46, %p47
      %p49 = scmp.ne.s32.totalorder %s41, %s44
      %p50 = scmp.eq.s32.totalorder %s17, 0
      %p51 = por %p49, %p50
      %p52 = scmp.ne.s32.totalorder %s41, %s44
      %p53 = scmp.eq.s32.totalorder %s22, 3
      %p54 = por %p52, %p53
      %p55 = scmp.ne.s32.totalorder %s44, %s45
      %p56 = scmp.eq.s32.totalorder %s22, 0
      %p57 = por %p55, %p56
      %p58 = scmp.ne.s32.totalorder %s44, %s45
      %p59 = scmp.eq.s32.totalorder %s23, 3
      %p60 = por %p58, %p59
      %p62 = scmp.ne.s32.totalorder %s45, %s61
      %p63 = scmp.eq.s32.totalorder %s23, 0
      %p64 = por %p62, %p63
      %s65 = ssub.s32 %s25, %s32
      %p66 = scmp.eq.s32.totalorder %s65, 0
      %s68 = sadd.s32 %s67, 1
      %s69 = scalar_select %p66, %s67, %s68
      %p72 = pneg %p66
      %p73 = scmp.eq.s32.totalorder %s17, 3
      %p74 = por %p72, %p73
      %p75 = scmp.ne.s32.totalorder %s67, %s70
      %p76 = scmp.eq.s32.totalorder %s17, 0
      %p77 = por %p75, %p76
      %p78 = scmp.ne.s32.totalorder %s67, %s70
      %p79 = scmp.eq.s32.totalorder %s22, 3
      %p80 = por %p78, %p79
      %p81 = scmp.ne.s32.totalorder %s70, %s71
      %p82 = scmp.eq.s32.totalorder %s22, 0
      %p83 = por %p81, %p82
      %p84 = scmp.ne.s32.totalorder %s70, %s71
      %p85 = scmp.eq.s32.totalorder %s23, 3
      %p86 = por %p84, %p85
      %p88 = scmp.ne.s32.totalorder %s71, %s87
      %p89 = scmp.eq.s32.totalorder %s23, 0
      %p90 = por %p88, %p89
      %s92 = sadd.s32 %s91, 1
      %p95 = scmp.eq.s32.totalorder %s17, 3
      %p96 = scmp.ne.s32.totalorder %s91, %s93
      %p97 = scmp.eq.s32.totalorder %s17, 0
      %p98 = por %p96, %p97
      %p99 = scmp.ne.s32.totalorder %s91, %s93
      %p100 = scmp.eq.s32.totalorder %s22, 3
      %p101 = por %p99, %p100
      %p102 = scmp.ne.s32.totalorder %s93, %s94
      %p103 = scmp.eq.s32.totalorder %s22, 0
      %p104 = por %p102, %p103
      %p105 = scmp.ne.s32.totalorder %s93, %s94
      %p106 = scmp.eq.s32.totalorder %s23, 3
      %p107 = por %p105, %p106
      %p109 = scmp.ne.s32.totalorder %s94, %s108
      %p110 = scmp.eq.s32.totalorder %s23, 0
      %p111 = por %p109, %p110
      %s113 = sadd.s32 %s112, 1
      %p116 = scmp.eq.s32.totalorder %s17, 3
      %p117 = scmp.ne.s32.totalorder %s112, %s114
      %p118 = scmp.eq.s32.totalorder %s17, 0
      %p119 = por %p117, %p118
      %p120 = scmp.ne.s32.totalorder %s112, %s114
      %p121 = scmp.eq.s32.totalorder %s22, 3
      %p122 = por %p120, %p121
      %p123 = scmp.ne.s32.totalorder %s114, %s115
      %p124 = scmp.eq.s32.totalorder %s22, 0
      %p125 = por %p123, %p124
      %p126 = scmp.ne.s32.totalorder %s114, %s115
      %p127 = scmp.eq.s32.totalorder %s23, 3
      %p128 = por %p126, %p127
      %p130 = scmp.ne.s32.totalorder %s115, %s129
      %p131 = scmp.eq.s32.totalorder %s23, 0
      %p132 = por %p130, %p131
      %s134 = sadd.s32 %s133, 1
      %p137 = scmp.eq.s32.totalorder %s17, 3
      %p138 = scmp.ne.s32.totalorder %s133, %s135
      %p139 = scmp.eq.s32.totalorder %s17, 0
      %p140 = por %p138, %p139
      %p141 = scmp.ne.s32.totalorder %s133, %s135
      %p142 = scmp.eq.s32.totalorder %s22, 3
      %p143 = por %p141, %p142
      %p144 = scmp.ne.s32.totalorder %s135, %s136
      %p145 = scmp.eq.s32.totalorder %s22, 0
      %p146 = por %p144, %p145
      %p147 = scmp.ne.s32.totalorder %s135, %s136
      %p148 = scmp.eq.s32.totalorder %s23, 3
      %p149 = por %p147, %p148
      %p151 = scmp.ne.s32.totalorder %s136, %s150
      %p152 = scmp.eq.s32.totalorder %s23, 0
      %p153 = por %p151, %p152
      %s155 = sadd.s32 %s154, 1
      %p158 = scmp.eq.s32.totalorder %s17, 3
      %p159 = scmp.ne.s32.totalorder %s154, %s156
      %p160 = scmp.eq.s32.totalorder %s17, 0
      %p161 = por %p159, %p160
      %p162 = scmp.ne.s32.totalorder %s154, %s156
      %p163 = scmp.eq.s32.totalorder %s22, 3
      %p164 = por %p162, %p163
      %p165 = scmp.ne.s32.totalorder %s156, %s157
      %p166 = scmp.eq.s32.totalorder %s22, 0
      %p167 = por %p165, %p166
      %p168 = scmp.ne.s32.totalorder %s156, %s157
      %p169 = scmp.eq.s32.totalorder %s23, 3
      %p170 = por %p168, %p169
      %p172 = scmp.ne.s32.totalorder %s157, %s171
      %p173 = scmp.eq.s32.totalorder %s23, 0
      %p174 = por %p172, %p173
      %s176 = sadd.s32 %s175, 1
      %p179 = scmp.eq.s32.totalorder %s17, 3
      %p180 = scmp.ne.s32.totalorder %s175, %s177
      %p181 = scmp.eq.s32.totalorder %s17, 0
      %p182 = por %p180, %p181
      %p183 = scmp.ne.s32.totalorder %s175, %s177
      %p184 = scmp.eq.s32.totalorder %s22, 3
      %p185 = por %p183, %p184
      %p186 = scmp.ne.s32.totalorder %s177, %s178
      %p187 = scmp.eq.s32.totalorder %s22, 0
      %p188 = por %p186, %p187
      %p189 = scmp.ne.s32.totalorder %s177, %s178
      %p190 = scmp.eq.s32.totalorder %s23, 3
      %p191 = por %p189, %p190
      %p193 = scmp.ne.s32.totalorder %s178, %s192
      %p194 = scmp.eq.s32.totalorder %s23, 0
      %p195 = por %p193, %p194
      %s197 = sadd.s32 %s196, 1
      %p200 = scmp.eq.s32.totalorder %s17, 3
      %p201 = scmp.ne.s32.totalorder %s196, %s198
      %p202 = scmp.eq.s32.totalorder %s17, 0
      %p203 = por %p201, %p202
      %p204 = scmp.ne.s32.totalorder %s196, %s198
      %p205 = scmp.eq.s32.totalorder %s22, 3
      %p206 = por %p204, %p205
      %p207 = scmp.ne.s32.totalorder %s198, %s199
      %p208 = scmp.eq.s32.totalorder %s22, 0
      %p209 = por %p207, %p208
      %p210 = scmp.ne.s32.totalorder %s198, %s199
      %p211 = scmp.eq.s32.totalorder %s23, 3
      %p212 = por %p210, %p211
      %p214 = scmp.ne.s32.totalorder %s199, %s213
      %p215 = scmp.eq.s32.totalorder %s23, 0
      %p216 = por %p214, %p215
      %s218 = sadd.s32 %s217, 1
      %p221 = scmp.eq.s32.totalorder %s17, 3
      %p222 = scmp.ne.s32.totalorder %s217, %s219
      %p223 = scmp.eq.s32.totalorder %s17, 0
      %p224 = por %p222, %p223
      %p225 = scmp.ne.s32.totalorder %s217, %s219
      %p226 = scmp.eq.s32.totalorder %s22, 3
      %p227 = por %p225, %p226
      %p228 = scmp.ne.s32.totalorder %s219, %s220
      %p229 = scmp.eq.s32.totalorder %s22, 0
      %p230 = por %p228, %p229
      %p231 = scmp.ne.s32.totalorder %s219, %s220
      %p232 = scmp.eq.s32.totalorder %s23, 3
      %p233 = por %p231, %p232
      %p235 = scmp.ne.s32.totalorder %s220, %s234
      %p236 = scmp.eq.s32.totalorder %s23, 0
      %p237 = por %p235, %p236
      %s238 = ssub.s32 %s24, %s36
      %p239 = scmp.eq.s32.totalorder %s238, 0
      %s241 = sadd.s32 %s240, 1
      %s242 = scalar_select %p239, %s240, %s241
      %p245 = pneg %p239
      %p246 = scmp.eq.s32.totalorder %s17, 3
      %p247 = por %p245, %p246
      %p248 = scmp.ne.s32.totalorder %s240, %s243
      %p249 = scmp.eq.s32.totalorder %s17, 0
      %p250 = por %p248, %p249
      %p251 = scmp.ne.s32.totalorder %s240, %s243
      %p252 = scmp.eq.s32.totalorder %s22, 3
      %p253 = por %p251, %p252
      %p254 = scmp.ne.s32.totalorder %s243, %s244
      %p255 = scmp.eq.s32.totalorder %s22, 0
      %p256 = por %p254, %p255
      %p257 = scmp.ne.s32.totalorder %s243, %s244
      %p258 = scmp.eq.s32.totalorder %s23, 3
      %p259 = por %p257, %p258
      %p261 = scmp.ne.s32.totalorder %s244, %s260
      %p262 = scmp.eq.s32.totalorder %s23, 0
      %p263 = por %p261, %p262
      %p264 = scmp.le.s32.totalorder 1, %s17
      %p265 = scmp.lt.s32.totalorder %s17, 5
      %p266 = pnand %p264, %p265
      %p267 = pneg %p266
      // Predicated region
      $region9: #{tpu_custom_call.1} parent=5 // pred_check
        _
      $region10: #{tpu_custom_call.1} parent=5 // pred_check_branch
        %269 = sbr.rel (%p266) target = $region12
      $region11: #{tpu_custom_call.1} parent=5 // pred_region
        %s270 = ssub.s32 %s17, 1
        // Predicated region
        $region13: #{tpu_custom_call.1} parent=11 // pred_check
          %p271 = pneg %p83
        $region14: #{tpu_custom_call.1} parent=11 // pred_check_branch
          %273 = sbr.rel (%p271) target = $region16
        $region15: #{tpu_custom_call.1} parent=11 // pred_region
          %s274 = smul.u32 32, %s27
          %s276 = ssub.s32 4096, 4096
          %277 = vsyncadd [#allocation4], %s276
          %s278 = smul.addr %s274, 2
          %s279 = smul.addr %s278, 64
          %s280 = scalar_lea.hbm %s1, %s279
          %s281 = sshll.u32 [#allocation3], 4
          %s282 = int_to_ptr.vmem [resolvable:$true] %s281
          %287 = dma.hbm_to_vmem [thread:$0]  %s280, 4096, %s282, [#allocation4], 128, 128, 8
        $region16: #{tpu_custom_call.1} parent=11 // pred_fallthru
          _
        // Predicated region
        $region17: #{tpu_custom_call.1} parent=11 // pred_check
          %p288 = pneg %p104
        $region18: #{tpu_custom_call.1} parent=11 // pred_check_branch
          %290 = sbr.rel (%p288) target = $region20
        $region19: #{tpu_custom_call.1} parent=11 // pred_region
          _
        $region20: #{tpu_custom_call.1} parent=11 // pred_fallthru
          _
        // Predicated region
        $region21: #{tpu_custom_call.1} parent=11 // pred_check
          %p291 = pneg %p125
        $region22: #{tpu_custom_call.1} parent=11 // pred_check_branch
          %293 = sbr.rel (%p291) target = $region24
        $region23: #{tpu_custom_call.1} parent=11 // pred_region
          %s295 = ssub.s32 4096, 4096
          %296 = vsyncadd [#allocation6], %s295
          %s297 = sshll.u32 [#allocation5], 4
          %s298 = int_to_ptr.vmem [resolvable:$true] %s297
          %303 = dma.hbm_to_vmem [thread:$0]  %s3, 4096, %s298, [#allocation6], 128, 128, 8
        $region24: #{tpu_custom_call.1} parent=11 // pred_fallthru
          _
        // Predicated region
        $region25: #{tpu_custom_call.1} parent=11 // pred_check
          %p304 = pneg %p146
        $region26: #{tpu_custom_call.1} parent=11 // pred_check_branch
          %306 = sbr.rel (%p304) target = $region28
        $region27: #{tpu_custom_call.1} parent=11 // pred_region
          _
        $region28: #{tpu_custom_call.1} parent=11 // pred_fallthru
          _
        // Predicated region
        $region29: #{tpu_custom_call.1} parent=11 // pred_check
          %p307 = pneg %p167
        $region30: #{tpu_custom_call.1} parent=11 // pred_check_branch
          %309 = sbr.rel (%p307) target = $region32
        $region31: #{tpu_custom_call.1} parent=11 // pred_region
          %s311 = ssub.s32 4096, 4096
          %312 = vsyncadd [#allocation6], %s311
          %s313 = sshll.u32 [#allocation7], 4
          %s314 = int_to_ptr.vmem [resolvable:$true] %s313
          %319 = dma.hbm_to_vmem [thread:$0]  %s5, 4096, %s314, [#allocation6], 128, 128, 8
        $region32: #{tpu_custom_call.1} parent=11 // pred_fallthru
          _
        // Predicated region
        $region33: #{tpu_custom_call.1} parent=11 // pred_check
          %p320 = pneg %p188
        $region34: #{tpu_custom_call.1} parent=11 // pred_check_branch
          %322 = sbr.rel (%p320) target = $region36
        $region35: #{tpu_custom_call.1} parent=11 // pred_region
          _
        $region36: #{tpu_custom_call.1} parent=11 // pred_fallthru
          _
        // Predicated region
        $region37: #{tpu_custom_call.1} parent=11 // pred_check
          %p323 = pneg %p209
        $region38: #{tpu_custom_call.1} parent=11 // pred_check_branch
          %325 = sbr.rel (%p323) target = $region40
        $region39: #{tpu_custom_call.1} parent=11 // pred_region
          _
        $region40: #{tpu_custom_call.1} parent=11 // pred_fallthru
          _
        // Predicated region
        $region41: #{tpu_custom_call.1} parent=11 // pred_check
          %p326 = pneg %p230
        $region42: #{tpu_custom_call.1} parent=11 // pred_check_branch
          %328 = sbr.rel (%p326) target = $region44
        $region43: #{tpu_custom_call.1} parent=11 // pred_region
          _
        $region44: #{tpu_custom_call.1} parent=11 // pred_fallthru
          _
      $region12: #{tpu_custom_call.1} parent=5 // pred_fallthru
        _
      %p329 = scmp.lt.s32.totalorder %s17, 4
      // Predicated region
      $region45: #{tpu_custom_call.1} parent=5 // pred_check
        %p330 = pneg %p329
      $region46: #{tpu_custom_call.1} parent=5 // pred_check_branch
        %332 = sbr.rel (%p330) target = $region48
      $region47: #{tpu_custom_call.1} parent=5 // pred_region
        // Predicated region
        $region49: #{tpu_custom_call.1} parent=47 // pred_check
          %p333 = pneg %p51
        $region50: #{tpu_custom_call.1} parent=47 // pred_check_branch
          %335 = sbr.rel (%p333) target = $region52
        $region51: #{tpu_custom_call.1} parent=47 // pred_region
          %s336 = smul.u32 2, %s24
          %s337 = smul.u32 2, %s25
          %p338 = scmp.lt.s32.totalorder %s336, 7
          %s339 = scalar_select %p338, %s336, 7
          %p340 = scmp.lt.s32.totalorder %s337, 1
          %s341 = scalar_select %p340, %s337, 1
          %s342 = smul.addr %s339, 2
          %s343 = sadd.s32 %s341, %s342
          %s344 = smul.addr %s343, 8
          %s345 = scalar_lea.vmem %s0, %s344
          %s346 = smul.u32 2, %s24
          %s347 = smul.u32 2, %s25
        $region52: #{tpu_custom_call.1} parent=47 // pred_fallthru
          _
      $region48: #{tpu_custom_call.1} parent=5 // pred_fallthru
        _
      %p348 = scmp.le.s32.totalorder 1, %s17
      %p349 = scmp.lt.s32.totalorder %s17, 5
      %p350 = pnand %p348, %p349
      %p351 = pneg %p350
      // Predicated region
      $region53: #{tpu_custom_call.1} parent=5 // pred_check
        _
      $region54: #{tpu_custom_call.1} parent=5 // pred_check_branch
        %353 = sbr.rel (%p350) target = $region56
      $region55: #{tpu_custom_call.1} parent=5 // pred_region
        %s354 = ssub.s32 %s17, 1
        // Predicated region
        $region57: #{tpu_custom_call.1} parent=55 // pred_check
          %p355 = pneg %p83
        $region58: #{tpu_custom_call.1} parent=55 // pred_check_branch
          %357 = sbr.rel (%p355) target = $region60
        $region59: #{tpu_custom_call.1} parent=55 // pred_region
          %358 = dma.done [#allocation4], 4096
        $region60: #{tpu_custom_call.1} parent=55 // pred_fallthru
          _
        // Predicated region
        $region61: #{tpu_custom_call.1} parent=55 // pred_check
          %p359 = pneg %p125
        $region62: #{tpu_custom_call.1} parent=55 // pred_check_branch
          %361 = sbr.rel (%p359) target = $region64
        $region63: #{tpu_custom_call.1} parent=55 // pred_region
          %362 = dma.done [#allocation6], 4096
        $region64: #{tpu_custom_call.1} parent=55 // pred_fallthru
          _
        // Predicated region
        $region65: #{tpu_custom_call.1} parent=55 // pred_check
          %p363 = pneg %p167
        $region66: #{tpu_custom_call.1} parent=55 // pred_check_branch
          %365 = sbr.rel (%p363) target = $region68
        $region67: #{tpu_custom_call.1} parent=55 // pred_region
          %366 = dma.done [#allocation6], 4096
        $region68: #{tpu_custom_call.1} parent=55 // pred_fallthru
          _
        %s367 = smul.u32 2, %s26
        %s368 = smul.u32 2, %s27
        %p369 = scmp.lt.s32.totalorder %s367, 7
        %s370 = scalar_select %p369, %s367, 7
        %p371 = scmp.lt.s32.totalorder %s368, 1
        %s372 = scalar_select %p371, %s368, 1
        %s373 = smul.addr %s370, 2
        %s374 = sadd.s32 %s372, %s373
        %s375 = smul.addr %s374, 8
        %s376 = scalar_lea.vmem %s0, %s375
        %p377 = pneg %p57
        %p378 = pneg %p54
        %p379 = pneg %p83
        %p380 = pneg %p80
        %p381 = pneg %p104
        %p382 = pneg %p101
        %p383 = pneg %p125
        %p384 = pneg %p122
        %p385 = pneg %p146
        %p386 = pneg %p143
        %p387 = pneg %p167
        %p388 = pneg %p164
        %p389 = pneg %p188
        %p390 = pneg %p185
        %p391 = pneg %p209
        %p392 = pneg %p206
        %p393 = pneg %p230
        %p394 = pneg %p227
        %p395 = pneg %p256
        %p396 = pneg %p253
        %s397 = smul.u32 2, %s26
        %p398 = scmp.lt.s32.totalorder %s397, 7
        %s399 = scalar_select %p398, %s397, 7
        %s400 = smul.addr %s399, 8
        %s401 = scalar_lea.vmem %s9, %s400
        %s402 = smul.u32 2, %s26
        %s403 = smul.u32 2, %s27
        %p404 = scmp.lt.s32.totalorder %s402, 7
        %s405 = scalar_select %p404, %s402, 7
        %p406 = scmp.lt.s32.totalorder %s403, 1
        %s407 = scalar_select %p406, %s403, 1
        %s408 = smul.addr %s405, 2
        %s409 = sadd.s32 %s407, %s408
        %s410 = smul.addr %s409, 8
        %s411 = scalar_lea.vmem %s0, %s410
        %s412 = smul.u32 2, %s26
        %s413 = smul.u32 2, %s27
        %s414 = smul.u32 32, %s27
        %s415 = smul.u32 2, %s26
        %p416 = scmp.lt.s32.totalorder %s415, 7
        %s417 = scalar_select %p416, %s415, 7
        %s418 = smul.addr %s417, 8
        %s419 = scalar_lea.vmem %s9, %s418
        %s420 = smul.u32 2, %s26
        %p422 = scmp.eq.s32.totalorder %s27, 0
        // Predicated region
        $region69: #{tpu_custom_call.1} parent=55 // pred_check
          %p423 = pneg %p422
        $region70: #{tpu_custom_call.1} parent=55 // pred_check_branch
          %425 = sbr.rel (%p423) target = $region72
        $region71: #{tpu_custom_call.1} parent=55 // pred_region
          %426 = vst [vmem:[#allocation2] sm:$0xff] 0.0
          %427 = vst [vmem:[#allocation2 + $0x8] sm:$0xff] 0.0
          %428 = vst [vmem:[#allocation2 + $0x10] sm:$0xff] 0.0
          %429 = vst [vmem:[#allocation2 + $0x18] sm:$0xff] 0.0
        $region72: #{tpu_custom_call.1} parent=55 // pred_fallthru
          _
        %v430 = vld [vmem:[#allocation2] sm:$0xff]
        %v431 = vld [vmem:[#allocation2 + $0x8] sm:$0xff]
        %v432 = vld [vmem:[#allocation2 + $0x10] sm:$0xff]
        %v433 = vld [vmem:[#allocation2 + $0x18] sm:$0xff]
        %v434 = vld [vmem:[%s411] sm:$0xff]
        %v435 = vld [vmem:[%s411 + $0x8] sm:$0xff]
        %v436 = vld [vmem:[%s411 + $0x10] sm:$0xff]
        %v437 = vld [vmem:[%s411 + $0x18] sm:$0xff]
        %v438 = vpack.c.bf16 %v436, %v434
        %v439 = vpack.c.bf16 %v437, %v435
        %v440 = vld [vmem:[#allocation3] sm:$0xff]
        %v441 = vld [vmem:[#allocation3 + $0x8] sm:$0xff]
        %v442 = vld [vmem:[#allocation3 + $0x10] sm:$0xff]
        %v443 = vld [vmem:[#allocation3 + $0x18] sm:$0xff]
        %v444 = vld [vmem:[#allocation3 + $0x20] sm:$0xff]
        %v445 = vld [vmem:[#allocation3 + $0x28] sm:$0xff]
        %v446 = vld [vmem:[#allocation3 + $0x30] sm:$0xff]
        %v447 = vld [vmem:[#allocation3 + $0x38] sm:$0xff]
        %v448 = vld [vmem:[#allocation3 + $0x40] sm:$0xff]
        %v449 = vld [vmem:[#allocation3 + $0x48] sm:$0xff]
        %v450 = vld [vmem:[#allocation3 + $0x50] sm:$0xff]
        %v451 = vld [vmem:[#allocation3 + $0x58] sm:$0xff]
        %v452 = vld [vmem:[#allocation3 + $0x60] sm:$0xff]
        %v453 = vld [vmem:[#allocation3 + $0x68] sm:$0xff]
        %v454 = vld [vmem:[#allocation3 + $0x70] sm:$0xff]
        %v455 = vld [vmem:[#allocation3 + $0x78] sm:$0xff]
        %v456 = vld [vmem:[#allocation3 + $0x80] sm:$0xff]
        %v457 = vld [vmem:[#allocation3 + $0x88] sm:$0xff]
        %v458 = vld [vmem:[#allocation3 + $0x90] sm:$0xff]
        %v459 = vld [vmem:[#allocation3 + $0x98] sm:$0xff]
        %v460 = vld [vmem:[#allocation3 + $0xa0] sm:$0xff]
        %v461 = vld [vmem:[#allocation3 + $0xa8] sm:$0xff]
        %v462 = vld [vmem:[#allocation3 + $0xb0] sm:$0xff]
        %v463 = vld [vmem:[#allocation3 + $0xb8] sm:$0xff]
        %v464 = vld [vmem:[#allocation3 + $0xc0] sm:$0xff]
        %v465 = vld [vmem:[#allocation3 + $0xc8] sm:$0xff]
        %v466 = vld [vmem:[#allocation3 + $0xd0] sm:$0xff]
        %v467 = vld [vmem:[#allocation3 + $0xd8] sm:$0xff]
        %v468 = vld [vmem:[#allocation3 + $0xe0] sm:$0xff]
        %v469 = vld [vmem:[#allocation3 + $0xe8] sm:$0xff]
        %v470 = vld [vmem:[#allocation3 + $0xf0] sm:$0xff]
        %v471 = vld [vmem:[#allocation3 + $0xf8] sm:$0xff]
        %v504 = vunpack.c.l.b16 %v440
        %v505 = vunpack.c.h.b16 %v440
        %v506 = vunpack.c.l.b16 %v441
        %v507 = vunpack.c.h.b16 %v441
        %v508 = vunpack.c.l.b16 %v442
        %v509 = vunpack.c.h.b16 %v442
        %v510 = vunpack.c.l.b16 %v443
        %v511 = vunpack.c.h.b16 %v443
        %v512 = vunpack.c.l.b16 %v444
        %v513 = vunpack.c.h.b16 %v444
        %v514 = vunpack.c.l.b16 %v445
        %v515 = vunpack.c.h.b16 %v445
        %v516 = vunpack.c.l.b16 %v446
        %v517 = vunpack.c.h.b16 %v446
        %v518 = vunpack.c.l.b16 %v447
        %v519 = vunpack.c.h.b16 %v447
        %v520 = vunpack.c.l.b16 %v448
        %v521 = vunpack.c.h.b16 %v448
        %v522 = vunpack.c.l.b16 %v449
        %v523 = vunpack.c.h.b16 %v449
        %v524 = vunpack.c.l.b16 %v450
        %v525 = vunpack.c.h.b16 %v450
        %v526 = vunpack.c.l.b16 %v451
        %v527 = vunpack.c.h.b16 %v451
        %v528 = vunpack.c.l.b16 %v452
        %v529 = vunpack.c.h.b16 %v452
        %v530 = vunpack.c.l.b16 %v453
        %v531 = vunpack.c.h.b16 %v453
        %v532 = vunpack.c.l.b16 %v454
        %v533 = vunpack.c.h.b16 %v454
        %v534 = vunpack.c.l.b16 %v455
        %v535 = vunpack.c.h.b16 %v455
        %v536 = vunpack.c.l.b16 %v456
        %v537 = vunpack.c.h.b16 %v456
        %v538 = vunpack.c.l.b16 %v457
        %v539 = vunpack.c.h.b16 %v457
        %v540 = vunpack.c.l.b16 %v458
        %v541 = vunpack.c.h.b16 %v458
        %v542 = vunpack.c.l.b16 %v459
        %v543 = vunpack.c.h.b16 %v459
        %v544 = vunpack.c.l.b16 %v460
        %v545 = vunpack.c.h.b16 %v460
        %v546 = vunpack.c.l.b16 %v461
        %v547 = vunpack.c.h.b16 %v461
        %v548 = vunpack.c.l.b16 %v462
        %v549 = vunpack.c.h.b16 %v462
        %v550 = vunpack.c.l.b16 %v463
        %v551 = vunpack.c.h.b16 %v463
        %v552 = vunpack.c.l.b16 %v464
        %v553 = vunpack.c.h.b16 %v464
        %v554 = vunpack.c.l.b16 %v465
        %v555 = vunpack.c.h.b16 %v465
        %v556 = vunpack.c.l.b16 %v466
        %v557 = vunpack.c.h.b16 %v466
        %v558 = vunpack.c.l.b16 %v467
        %v559 = vunpack.c.h.b16 %v467
        %v560 = vunpack.c.l.b16 %v468
        %v561 = vunpack.c.h.b16 %v468
        %v562 = vunpack.c.l.b16 %v469
        %v563 = vunpack.c.h.b16 %v469
        %v564 = vunpack.c.l.b16 %v470
        %v565 = vunpack.c.h.b16 %v470
        %v566 = vunpack.c.l.b16 %v471
        %v567 = vunpack.c.h.b16 %v471
        %v568 = vpack.c.b16 %v506, %v504
        %v569 = vpack.c.b16 %v507, %v505
        %v570 = vpack.c.b16 %v510, %v508
        %v571 = vpack.c.b16 %v511, %v509
        %v572 = vpack.c.b16 %v514, %v512
        %v573 = vpack.c.b16 %v515, %v513
        %v574 = vpack.c.b16 %v518, %v516
        %v575 = vpack.c.b16 %v519, %v517
        %v576 = vpack.c.b16 %v522, %v520
        %v577 = vpack.c.b16 %v523, %v521
        %v578 = vpack.c.b16 %v526, %v524
        %v579 = vpack.c.b16 %v527, %v525
        %v580 = vpack.c.b16 %v530, %v528
        %v581 = vpack.c.b16 %v531, %v529
        %v582 = vpack.c.b16 %v534, %v532
        %v583 = vpack.c.b16 %v535, %v533
        %v584 = vpack.c.b16 %v538, %v536
        %v585 = vpack.c.b16 %v539, %v537
        %v586 = vpack.c.b16 %v542, %v540
        %v587 = vpack.c.b16 %v543, %v541
        %v588 = vpack.c.b16 %v546, %v544
        %v589 = vpack.c.b16 %v547, %v545
        %v590 = vpack.c.b16 %v550, %v548
        %v591 = vpack.c.b16 %v551, %v549
        %v592 = vpack.c.b16 %v554, %v552
        %v593 = vpack.c.b16 %v555, %v553
        %v594 = vpack.c.b16 %v558, %v556
        %v595 = vpack.c.b16 %v559, %v557
        %v596 = vpack.c.b16 %v562, %v560
        %v597 = vpack.c.b16 %v563, %v561
        %v598 = vpack.c.b16 %v566, %v564
        %v599 = vpack.c.b16 %v567, %v565
        %632 = vmatprep.subr.bf16.mxu0 %v569
        %633 = vmatpush1.bf16.msra.mxu0 %v568
        %634 = vmatprep.subr.bf16.mxu0 %v571
        %635 = vmatpush1.bf16.msra.mxu0 %v570
        %636 = vmatprep.subr.bf16.mxu0 %v573
        %637 = vmatpush1.bf16.msra.mxu0 %v572
        %638 = vmatprep.subr.bf16.mxu0 %v575
        %639 = vmatpush1.bf16.msra.mxu0 %v574
        %640 = vmatprep.subr.bf16.mxu0 %v577
        %641 = vmatpush1.bf16.msra.mxu0 %v576
        %642 = vmatprep.subr.bf16.mxu0 %v579
        %643 = vmatpush1.bf16.msra.mxu0 %v578
        %644 = vmatprep.subr.bf16.mxu0 %v581
        %645 = vmatpush1.bf16.msra.mxu0 %v580
        %646 = vmatprep.subr.bf16.mxu0 %v583
        %647 = vmatpush1.bf16.msra.mxu0 %v582
        %648 = vmatprep.subr.bf16.mxu0 %v585
        %649 = vmatpush1.bf16.msra.mxu0 %v584
        %650 = vmatprep.subr.bf16.mxu0 %v587
        %651 = vmatpush1.bf16.msra.mxu0 %v586
        %652 = vmatprep.subr.bf16.mxu0 %v589
        %653 = vmatpush1.bf16.msra.mxu0 %v588
        %654 = vmatprep.subr.bf16.mxu0 %v591
        %655 = vmatpush1.bf16.msra.mxu0 %v590
        %656 = vmatprep.subr.bf16.mxu0 %v593
        %657 = vmatpush1.bf16.msra.mxu0 %v592
        %658 = vmatprep.subr.bf16.mxu0 %v595
        %659 = vmatpush1.bf16.msra.mxu0 %v594
        %660 = vmatprep.subr.bf16.mxu0 %v597
        %661 = vmatpush1.bf16.msra.mxu0 %v596
        %662 = vmatprep.subr.bf16.mxu0 %v599
        %663 = vmatpush1.bf16.msra.mxu0 %v598
        %664 = vmatprep.mubr.bf16.mxu0 %v439
        %665 = vmatmul.mubr.bf16.gmra.mrb[0].mxu0 %v438
        %v666 = vpop.f32.mrb[0].mxu0
        %v667 = vadd.f32 0.0, %v666
        %v668 = vpop.f32.mrb[0].mxu0
        %v669 = vadd.f32 0.0, %v668
        %v670 = vpop.f32.mrb[0].mxu0
        %v671 = vadd.f32 0.0, %v670
        %v672 = vpop.f32.mrb[0].mxu0
        %v673 = vadd.f32 0.0, %v672
        %674 = vdwg.mxu0
        %v675 = vadd.f32 %v430, %v667
        %v676 = vadd.f32 %v431, %v669
        %v677 = vadd.f32 %v432, %v671
        %v678 = vadd.f32 %v433, %v673
        %679 = vst [vmem:[#allocation2] sm:$0xff] %v675
        %680 = vst [vmem:[#allocation2 + $0x8] sm:$0xff] %v676
        %681 = vst [vmem:[#allocation2 + $0x10] sm:$0xff] %v677
        %682 = vst [vmem:[#allocation2 + $0x18] sm:$0xff] %v678
        // Predicated region
        $region73: #{tpu_custom_call.1} parent=55 // pred_check
          %p683 = pneg %p422
        $region74: #{tpu_custom_call.1} parent=55 // pred_check_branch
          %685 = sbr.rel (%p683) target = $region76
        $region75: #{tpu_custom_call.1} parent=55 // pred_region
          %v686 = vld [vmem:[#allocation2] sm:$0xff]
          %v687 = vld [vmem:[#allocation2 + $0x8] sm:$0xff]
          %v688 = vld [vmem:[#allocation2 + $0x10] sm:$0xff]
          %v689 = vld [vmem:[#allocation2 + $0x18] sm:$0xff]
          %v690 = vld [vmem:[%s2] sm:$0x3]
          %v692 = vlaneseq
          %v693 = vshrl.u32 %v692, 7
          %v694 = vsub.s32 0, %v693
          %v695 = vrot.slane %v690, %v694
          %v696 = vlaneseq
          %v697 = vshrl.u32 %v696, 7
          %v698 = vsub.s32 1, %v697
          %v699 = vrot.slane %v690, %v698
          %v702 = vadd.f32 %v686, %v695
          %v703 = vadd.f32 %v687, %v699
          %v704 = vadd.f32 %v688, %v695
          %v705 = vadd.f32 %v689, %v699
          %v706 = vpack.c.bf16 %v704, %v702
          %v707 = vpack.c.bf16 %v705, %v703
          %v708 = vtanh.bf16.pop %v706
          %v709 = vtanh.bf16.pop %v707
          %v710 = vld [vmem:[#allocation5] sm:$0xff]
          %v711 = vld [vmem:[#allocation5 + $0x8] sm:$0xff]
          %v712 = vld [vmem:[#allocation5 + $0x10] sm:$0xff]
          %v713 = vld [vmem:[#allocation5 + $0x18] sm:$0xff]
          %v714 = vld [vmem:[#allocation5 + $0x20] sm:$0xff]
          %v715 = vld [vmem:[#allocation5 + $0x28] sm:$0xff]
          %v716 = vld [vmem:[#allocation5 + $0x30] sm:$0xff]
          %v717 = vld [vmem:[#allocation5 + $0x38] sm:$0xff]
          %v718 = vld [vmem:[#allocation5 + $0x40] sm:$0xff]
          %v719 = vld [vmem:[#allocation5 + $0x48] sm:$0xff]
          %v720 = vld [vmem:[#allocation5 + $0x50] sm:$0xff]
          %v721 = vld [vmem:[#allocation5 + $0x58] sm:$0xff]
          %v722 = vld [vmem:[#allocation5 + $0x60] sm:$0xff]
          %v723 = vld [vmem:[#allocation5 + $0x68] sm:$0xff]
          %v724 = vld [vmem:[#allocation5 + $0x70] sm:$0xff]
          %v725 = vld [vmem:[#allocation5 + $0x78] sm:$0xff]
          %v726 = vld [vmem:[#allocation5 + $0x80] sm:$0xff]
          %v727 = vld [vmem:[#allocation5 + $0x88] sm:$0xff]
          %v728 = vld [vmem:[#allocation5 + $0x90] sm:$0xff]
          %v729 = vld [vmem:[#allocation5 + $0x98] sm:$0xff]
          %v730 = vld [vmem:[#allocation5 + $0xa0] sm:$0xff]
          %v731 = vld [vmem:[#allocation5 + $0xa8] sm:$0xff]
          %v732 = vld [vmem:[#allocation5 + $0xb0] sm:$0xff]
          %v733 = vld [vmem:[#allocation5 + $0xb8] sm:$0xff]
          %v734 = vld [vmem:[#allocation5 + $0xc0] sm:$0xff]
          %v735 = vld [vmem:[#allocation5 + $0xc8] sm:$0xff]
          %v736 = vld [vmem:[#allocation5 + $0xd0] sm:$0xff]
          %v737 = vld [vmem:[#allocation5 + $0xd8] sm:$0xff]
          %v738 = vld [vmem:[#allocation5 + $0xe0] sm:$0xff]
          %v739 = vld [vmem:[#allocation5 + $0xe8] sm:$0xff]
          %v740 = vld [vmem:[#allocation5 + $0xf0] sm:$0xff]
          %v741 = vld [vmem:[#allocation5 + $0xf8] sm:$0xff]
          %v742 = vld [vmem:[%s4] sm:$0x3]
          %v744 = vlaneseq
          %v745 = vshrl.u32 %v744, 7
          %v746 = vsub.s32 0, %v745
          %v747 = vrot.slane %v742, %v746
          %v748 = vlaneseq
          %v749 = vshrl.u32 %v748, 7
          %v750 = vsub.s32 1, %v749
          %v751 = vrot.slane %v742, %v750
          %v786 = vunpack.c.l.b16 %v710
          %v787 = vunpack.c.h.b16 %v710
          %v788 = vunpack.c.l.b16 %v711
          %v789 = vunpack.c.h.b16 %v711
          %v790 = vunpack.c.l.b16 %v712
          %v791 = vunpack.c.h.b16 %v712
          %v792 = vunpack.c.l.b16 %v713
          %v793 = vunpack.c.h.b16 %v713
          %v794 = vunpack.c.l.b16 %v714
          %v795 = vunpack.c.h.b16 %v714
          %v796 = vunpack.c.l.b16 %v715
          %v797 = vunpack.c.h.b16 %v715
          %v798 = vunpack.c.l.b16 %v716
          %v799 = vunpack.c.h.b16 %v716
          %v800 = vunpack.c.l.b16 %v717
          %v801 = vunpack.c.h.b16 %v717
          %v802 = vunpack.c.l.b16 %v718
          %v803 = vunpack.c.h.b16 %v718
          %v804 = vunpack.c.l.b16 %v719
          %v805 = vunpack.c.h.b16 %v719
          %v806 = vunpack.c.l.b16 %v720
          %v807 = vunpack.c.h.b16 %v720
          %v808 = vunpack.c.l.b16 %v721
          %v809 = vunpack.c.h.b16 %v721
          %v810 = vunpack.c.l.b16 %v722
          %v811 = vunpack.c.h.b16 %v722
          %v812 = vunpack.c.l.b16 %v723
          %v813 = vunpack.c.h.b16 %v723
          %v814 = vunpack.c.l.b16 %v724
          %v815 = vunpack.c.h.b16 %v724
          %v816 = vunpack.c.l.b16 %v725
          %v817 = vunpack.c.h.b16 %v725
          %v818 = vunpack.c.l.b16 %v726
          %v819 = vunpack.c.h.b16 %v726
          %v820 = vunpack.c.l.b16 %v727
          %v821 = vunpack.c.h.b16 %v727
          %v822 = vunpack.c.l.b16 %v728
          %v823 = vunpack.c.h.b16 %v728
          %v824 = vunpack.c.l.b16 %v729
          %v825 = vunpack.c.h.b16 %v729
          %v826 = vunpack.c.l.b16 %v730
          %v827 = vunpack.c.h.b16 %v730
          %v828 = vunpack.c.l.b16 %v731
          %v829 = vunpack.c.h.b16 %v731
          %v830 = vunpack.c.l.b16 %v732
          %v831 = vunpack.c.h.b16 %v732
          %v832 = vunpack.c.l.b16 %v733
          %v833 = vunpack.c.h.b16 %v733
          %v834 = vunpack.c.l.b16 %v734
          %v835 = vunpack.c.h.b16 %v734
          %v836 = vunpack.c.l.b16 %v735
          %v837 = vunpack.c.h.b16 %v735
          %v838 = vunpack.c.l.b16 %v736
          %v839 = vunpack.c.h.b16 %v736
          %v840 = vunpack.c.l.b16 %v737
          %v841 = vunpack.c.h.b16 %v737
          %v842 = vunpack.c.l.b16 %v738
          %v843 = vunpack.c.h.b16 %v738
          %v844 = vunpack.c.l.b16 %v739
          %v845 = vunpack.c.h.b16 %v739
          %v846 = vunpack.c.l.b16 %v740
          %v847 = vunpack.c.h.b16 %v740
          %v848 = vunpack.c.l.b16 %v741
          %v849 = vunpack.c.h.b16 %v741
          %v850 = vpack.c.b16 %v788, %v786
          %v851 = vpack.c.b16 %v789, %v787
          %v852 = vpack.c.b16 %v792, %v790
          %v853 = vpack.c.b16 %v793, %v791
          %v854 = vpack.c.b16 %v796, %v794
          %v855 = vpack.c.b16 %v797, %v795
          %v856 = vpack.c.b16 %v800, %v798
          %v857 = vpack.c.b16 %v801, %v799
          %v858 = vpack.c.b16 %v804, %v802
          %v859 = vpack.c.b16 %v805, %v803
          %v860 = vpack.c.b16 %v808, %v806
          %v861 = vpack.c.b16 %v809, %v807
          %v862 = vpack.c.b16 %v812, %v810
          %v863 = vpack.c.b16 %v813, %v811
          %v864 = vpack.c.b16 %v816, %v814
          %v865 = vpack.c.b16 %v817, %v815
          %v866 = vpack.c.b16 %v820, %v818
          %v867 = vpack.c.b16 %v821, %v819
          %v868 = vpack.c.b16 %v824, %v822
          %v869 = vpack.c.b16 %v825, %v823
          %v870 = vpack.c.b16 %v828, %v826
          %v871 = vpack.c.b16 %v829, %v827
          %v872 = vpack.c.b16 %v832, %v830
          %v873 = vpack.c.b16 %v833, %v831
          %v874 = vpack.c.b16 %v836, %v834
          %v875 = vpack.c.b16 %v837, %v835
          %v876 = vpack.c.b16 %v840, %v838
          %v877 = vpack.c.b16 %v841, %v839
          %v878 = vpack.c.b16 %v844, %v842
          %v879 = vpack.c.b16 %v845, %v843
          %v880 = vpack.c.b16 %v848, %v846
          %v881 = vpack.c.b16 %v849, %v847
          %914 = vmatprep.subr.bf16.mxu0 %v851
          %915 = vmatpush1.bf16.msra.mxu0 %v850
          %916 = vmatprep.subr.bf16.mxu0 %v853
          %917 = vmatpush1.bf16.msra.mxu0 %v852
          %918 = vmatprep.subr.bf16.mxu0 %v855
          %919 = vmatpush1.bf16.msra.mxu0 %v854
          %920 = vmatprep.subr.bf16.mxu0 %v857
          %921 = vmatpush1.bf16.msra.mxu0 %v856
          %922 = vmatprep.subr.bf16.mxu0 %v859
          %923 = vmatpush1.bf16.msra.mxu0 %v858
          %924 = vmatprep.subr.bf16.mxu0 %v861
          %925 = vmatpush1.bf16.msra.mxu0 %v860
          %926 = vmatprep.subr.bf16.mxu0 %v863
          %927 = vmatpush1.bf16.msra.mxu0 %v862
          %928 = vmatprep.subr.bf16.mxu0 %v865
          %929 = vmatpush1.bf16.msra.mxu0 %v864
          %930 = vmatprep.subr.bf16.mxu0 %v867
          %931 = vmatpush1.bf16.msra.mxu0 %v866
          %932 = vmatprep.subr.bf16.mxu0 %v869
          %933 = vmatpush1.bf16.msra.mxu0 %v868
          %934 = vmatprep.subr.bf16.mxu0 %v871
          %935 = vmatpush1.bf16.msra.mxu0 %v870
          %936 = vmatprep.subr.bf16.mxu0 %v873
          %937 = vmatpush1.bf16.msra.mxu0 %v872
          %938 = vmatprep.subr.bf16.mxu0 %v875
          %939 = vmatpush1.bf16.msra.mxu0 %v874
          %940 = vmatprep.subr.bf16.mxu0 %v877
          %941 = vmatpush1.bf16.msra.mxu0 %v876
          %942 = vmatprep.subr.bf16.mxu0 %v879
          %943 = vmatpush1.bf16.msra.mxu0 %v878
          %944 = vmatprep.subr.bf16.mxu0 %v881
          %945 = vmatpush1.bf16.msra.mxu0 %v880
          %946 = vmatprep.mubr.bf16.mxu0 %v709
          %947 = vmatmul.mubr.bf16.gmra.mrb[0].mxu0 %v708
          %v948 = vpop.f32.mrb[0].mxu0
          %v949 = vadd.f32 %v747, %v948
          %v950 = vpop.f32.mrb[0].mxu0
          %v951 = vadd.f32 %v751, %v950
          %v952 = vpop.f32.mrb[0].mxu0
          %v953 = vadd.f32 %v747, %v952
          %v954 = vpop.f32.mrb[0].mxu0
          %v955 = vadd.f32 %v751, %v954
          %956 = vdwg.mxu0
          %v957 = vpack.c.bf16 %v953, %v949
          %v958 = vpack.c.bf16 %v955, %v951
          %v959 = vtanh.bf16.pop %v957
          %v960 = vtanh.bf16.pop %v958
          %v961 = vld [vmem:[#allocation7] sm:$0xff]
          %v962 = vld [vmem:[#allocation7 + $0x8] sm:$0xff]
          %v963 = vld [vmem:[#allocation7 + $0x10] sm:$0xff]
          %v964 = vld [vmem:[#allocation7 + $0x18] sm:$0xff]
          %v965 = vld [vmem:[#allocation7 + $0x20] sm:$0xff]
          %v966 = vld [vmem:[#allocation7 + $0x28] sm:$0xff]
          %v967 = vld [vmem:[#allocation7 + $0x30] sm:$0xff]
          %v968 = vld [vmem:[#allocation7 + $0x38] sm:$0xff]
          %v969 = vld [vmem:[#allocation7 + $0x40] sm:$0xff]
          %v970 = vld [vmem:[#allocation7 + $0x48] sm:$0xff]
          %v971 = vld [vmem:[#allocation7 + $0x50] sm:$0xff]
          %v972 = vld [vmem:[#allocation7 + $0x58] sm:$0xff]
          %v973 = vld [vmem:[#allocation7 + $0x60] sm:$0xff]
          %v974 = vld [vmem:[#allocation7 + $0x68] sm:$0xff]
          %v975 = vld [vmem:[#allocation7 + $0x70] sm:$0xff]
          %v976 = vld [vmem:[#allocation7 + $0x78] sm:$0xff]
          %v977 = vld [vmem:[#allocation7 + $0x80] sm:$0xff]
          %v978 = vld [vmem:[#allocation7 + $0x88] sm:$0xff]
          %v979 = vld [vmem:[#allocation7 + $0x90] sm:$0xff]
          %v980 = vld [vmem:[#allocation7 + $0x98] sm:$0xff]
          %v981 = vld [vmem:[#allocation7 + $0xa0] sm:$0xff]
          %v982 = vld [vmem:[#allocation7 + $0xa8] sm:$0xff]
          %v983 = vld [vmem:[#allocation7 + $0xb0] sm:$0xff]
          %v984 = vld [vmem:[#allocation7 + $0xb8] sm:$0xff]
          %v985 = vld [vmem:[#allocation7 + $0xc0] sm:$0xff]
          %v986 = vld [vmem:[#allocation7 + $0xc8] sm:$0xff]
          %v987 = vld [vmem:[#allocation7 + $0xd0] sm:$0xff]
          %v988 = vld [vmem:[#allocation7 + $0xd8] sm:$0xff]
          %v989 = vld [vmem:[#allocation7 + $0xe0] sm:$0xff]
          %v990 = vld [vmem:[#allocation7 + $0xe8] sm:$0xff]
          %v991 = vld [vmem:[#allocation7 + $0xf0] sm:$0xff]
          %v992 = vld [vmem:[#allocation7 + $0xf8] sm:$0xff]
          %v993 = vld [vmem:[%s6] sm:$0x3]
          %v995 = vlaneseq
          %v996 = vshrl.u32 %v995, 7
          %v997 = vsub.s32 0, %v996
          %v998 = vrot.slane %v993, %v997
          %v999 = vlaneseq
          %v1000 = vshrl.u32 %v999, 7
          %v1001 = vsub.s32 1, %v1000
          %v1002 = vrot.slane %v993, %v1001
          %v1037 = vunpack.c.l.b16 %v961
          %v1038 = vunpack.c.h.b16 %v961
          %v1039 = vunpack.c.l.b16 %v962
          %v1040 = vunpack.c.h.b16 %v962
          %v1041 = vunpack.c.l.b16 %v963
          %v1042 = vunpack.c.h.b16 %v963
          %v1043 = vunpack.c.l.b16 %v964
          %v1044 = vunpack.c.h.b16 %v964
          %v1045 = vunpack.c.l.b16 %v965
          %v1046 = vunpack.c.h.b16 %v965
          %v1047 = vunpack.c.l.b16 %v966
          %v1048 = vunpack.c.h.b16 %v966
          %v1049 = vunpack.c.l.b16 %v967
          %v1050 = vunpack.c.h.b16 %v967
          %v1051 = vunpack.c.l.b16 %v968
          %v1052 = vunpack.c.h.b16 %v968
          %v1053 = vunpack.c.l.b16 %v969
          %v1054 = vunpack.c.h.b16 %v969
          %v1055 = vunpack.c.l.b16 %v970
          %v1056 = vunpack.c.h.b16 %v970
          %v1057 = vunpack.c.l.b16 %v971
          %v1058 = vunpack.c.h.b16 %v971
          %v1059 = vunpack.c.l.b16 %v972
          %v1060 = vunpack.c.h.b16 %v972
          %v1061 = vunpack.c.l.b16 %v973
          %v1062 = vunpack.c.h.b16 %v973
          %v1063 = vunpack.c.l.b16 %v974
          %v1064 = vunpack.c.h.b16 %v974
          %v1065 = vunpack.c.l.b16 %v975
          %v1066 = vunpack.c.h.b16 %v975
          %v1067 = vunpack.c.l.b16 %v976
          %v1068 = vunpack.c.h.b16 %v976
          %v1069 = vunpack.c.l.b16 %v977
          %v1070 = vunpack.c.h.b16 %v977
          %v1071 = vunpack.c.l.b16 %v978
          %v1072 = vunpack.c.h.b16 %v978
          %v1073 = vunpack.c.l.b16 %v979
          %v1074 = vunpack.c.h.b16 %v979
          %v1075 = vunpack.c.l.b16 %v980
          %v1076 = vunpack.c.h.b16 %v980
          %v1077 = vunpack.c.l.b16 %v981
          %v1078 = vunpack.c.h.b16 %v981
          %v1079 = vunpack.c.l.b16 %v982
          %v1080 = vunpack.c.h.b16 %v982
          %v1081 = vunpack.c.l.b16 %v983
          %v1082 = vunpack.c.h.b16 %v983
          %v1083 = vunpack.c.l.b16 %v984
          %v1084 = vunpack.c.h.b16 %v984
          %v1085 = vunpack.c.l.b16 %v985
          %v1086 = vunpack.c.h.b16 %v985
          %v1087 = vunpack.c.l.b16 %v986
          %v1088 = vunpack.c.h.b16 %v986
          %v1089 = vunpack.c.l.b16 %v987
          %v1090 = vunpack.c.h.b16 %v987
          %v1091 = vunpack.c.l.b16 %v988
          %v1092 = vunpack.c.h.b16 %v988
          %v1093 = vunpack.c.l.b16 %v989
          %v1094 = vunpack.c.h.b16 %v989
          %v1095 = vunpack.c.l.b16 %v990
          %v1096 = vunpack.c.h.b16 %v990
          %v1097 = vunpack.c.l.b16 %v991
          %v1098 = vunpack.c.h.b16 %v991
          %v1099 = vunpack.c.l.b16 %v992
          %v1100 = vunpack.c.h.b16 %v992
          %v1101 = vpack.c.b16 %v1039, %v1037
          %v1102 = vpack.c.b16 %v1040, %v1038
          %v1103 = vpack.c.b16 %v1043, %v1041
          %v1104 = vpack.c.b16 %v1044, %v1042
          %v1105 = vpack.c.b16 %v1047, %v1045
          %v1106 = vpack.c.b16 %v1048, %v1046
          %v1107 = vpack.c.b16 %v1051, %v1049
          %v1108 = vpack.c.b16 %v1052, %v1050
          %v1109 = vpack.c.b16 %v1055, %v1053
          %v1110 = vpack.c.b16 %v1056, %v1054
          %v1111 = vpack.c.b16 %v1059, %v1057
          %v1112 = vpack.c.b16 %v1060, %v1058
          %v1113 = vpack.c.b16 %v1063, %v1061
          %v1114 = vpack.c.b16 %v1064, %v1062
          %v1115 = vpack.c.b16 %v1067, %v1065
          %v1116 = vpack.c.b16 %v1068, %v1066
          %v1117 = vpack.c.b16 %v1071, %v1069
          %v1118 = vpack.c.b16 %v1072, %v1070
          %v1119 = vpack.c.b16 %v1075, %v1073
          %v1120 = vpack.c.b16 %v1076, %v1074
          %v1121 = vpack.c.b16 %v1079, %v1077
          %v1122 = vpack.c.b16 %v1080, %v1078
          %v1123 = vpack.c.b16 %v1083, %v1081
          %v1124 = vpack.c.b16 %v1084, %v1082
          %v1125 = vpack.c.b16 %v1087, %v1085
          %v1126 = vpack.c.b16 %v1088, %v1086
          %v1127 = vpack.c.b16 %v1091, %v1089
          %v1128 = vpack.c.b16 %v1092, %v1090
          %v1129 = vpack.c.b16 %v1095, %v1093
          %v1130 = vpack.c.b16 %v1096, %v1094
          %v1131 = vpack.c.b16 %v1099, %v1097
          %v1132 = vpack.c.b16 %v1100, %v1098
          %1165 = vmatprep.subr.bf16.mxu0 %v1102
          %1166 = vmatpush1.bf16.msra.mxu0 %v1101
          %1167 = vmatprep.subr.bf16.mxu0 %v1104
          %1168 = vmatpush1.bf16.msra.mxu0 %v1103
          %1169 = vmatprep.subr.bf16.mxu0 %v1106
          %1170 = vmatpush1.bf16.msra.mxu0 %v1105
          %1171 = vmatprep.subr.bf16.mxu0 %v1108
          %1172 = vmatpush1.bf16.msra.mxu0 %v1107
          %1173 = vmatprep.subr.bf16.mxu0 %v1110
          %1174 = vmatpush1.bf16.msra.mxu0 %v1109
          %1175 = vmatprep.subr.bf16.mxu0 %v1112
          %1176 = vmatpush1.bf16.msra.mxu0 %v1111
          %1177 = vmatprep.subr.bf16.mxu0 %v1114
          %1178 = vmatpush1.bf16.msra.mxu0 %v1113
          %1179 = vmatprep.subr.bf16.mxu0 %v1116
          %1180 = vmatpush1.bf16.msra.mxu0 %v1115
          %1181 = vmatprep.subr.bf16.mxu0 %v1118
          %1182 = vmatpush1.bf16.msra.mxu0 %v1117
          %1183 = vmatprep.subr.bf16.mxu0 %v1120
          %1184 = vmatpush1.bf16.msra.mxu0 %v1119
          %1185 = vmatprep.subr.bf16.mxu0 %v1122
          %1186 = vmatpush1.bf16.msra.mxu0 %v1121
          %1187 = vmatprep.subr.bf16.mxu0 %v1124
          %1188 = vmatpush1.bf16.msra.mxu0 %v1123
          %1189 = vmatprep.subr.bf16.mxu0 %v1126
          %1190 = vmatpush1.bf16.msra.mxu0 %v1125
          %1191 = vmatprep.subr.bf16.mxu0 %v1128
          %1192 = vmatpush1.bf16.msra.mxu0 %v1127
          %1193 = vmatprep.subr.bf16.mxu0 %v1130
          %1194 = vmatpush1.bf16.msra.mxu0 %v1129
          %1195 = vmatprep.subr.bf16.mxu0 %v1132
          %1196 = vmatpush1.bf16.msra.mxu0 %v1131
          %1197 = vmatprep.mubr.bf16.mxu0 %v960
          %1198 = vmatmul.mubr.bf16.gmra.mrb[0].mxu0 %v959
          %v1199 = vpop.f32.mrb[0].mxu0
          %v1200 = vadd.f32 %v998, %v1199
          %v1201 = vpop.f32.mrb[0].mxu0
          %v1202 = vadd.f32 %v1002, %v1201
          %v1203 = vpop.f32.mrb[0].mxu0
          %v1204 = vadd.f32 %v998, %v1203
          %v1205 = vpop.f32.mrb[0].mxu0
          %v1206 = vadd.f32 %v1002, %v1205
          %1207 = vdwg.mxu0
          %v1208 = vpack.c.bf16 %v1204, %v1200
          %v1209 = vpack.c.bf16 %v1206, %v1202
          %v1210 = vtanh.bf16.pop %v1208
          %v1211 = vtanh.bf16.pop %v1209
          %v1212 = vld [vmem:[%s7] sm:$0xf]
          %v1213 = vld [vmem:[%s7 + $0x4] sm:$0xf]
          %v1214 = vld [vmem:[%s7 + $0x8] sm:$0xf]
          %v1215 = vld [vmem:[%s7 + $0xc] sm:$0xf]
          %v1216 = vld [vmem:[%s7 + $0x10] sm:$0xf]
          %v1217 = vld [vmem:[%s7 + $0x14] sm:$0xf]
          %v1218 = vld [vmem:[%s7 + $0x18] sm:$0xf]
          %v1219 = vld [vmem:[%s7 + $0x1c] sm:$0xf]
          %v1220 = vld [vmem:[%s7 + $0x20] sm:$0xf]
          %v1221 = vld [vmem:[%s7 + $0x24] sm:$0xf]
          %v1222 = vld [vmem:[%s7 + $0x28] sm:$0xf]
          %v1223 = vld [vmem:[%s7 + $0x2c] sm:$0xf]
          %v1224 = vld [vmem:[%s7 + $0x30] sm:$0xf]
          %v1225 = vld [vmem:[%s7 + $0x34] sm:$0xf]
          %v1226 = vld [vmem:[%s7 + $0x38] sm:$0xf]
          %v1227 = vld [vmem:[%s7 + $0x3c] sm:$0xf]
          %v1228 = vld [vmem:[%s7 + $0x40] sm:$0xf]
          %v1229 = vld [vmem:[%s7 + $0x44] sm:$0xf]
          %v1230 = vld [vmem:[%s7 + $0x48] sm:$0xf]
          %v1231 = vld [vmem:[%s7 + $0x4c] sm:$0xf]
          %v1232 = vld [vmem:[%s7 + $0x50] sm:$0xf]
          %v1233 = vld [vmem:[%s7 + $0x54] sm:$0xf]
          %v1234 = vld [vmem:[%s7 + $0x58] sm:$0xf]
          %v1235 = vld [vmem:[%s7 + $0x5c] sm:$0xf]
          %v1236 = vld [vmem:[%s7 + $0x60] sm:$0xf]
          %v1237 = vld [vmem:[%s7 + $0x64] sm:$0xf]
          %v1238 = vld [vmem:[%s7 + $0x68] sm:$0xf]
          %v1239 = vld [vmem:[%s7 + $0x6c] sm:$0xf]
          %v1240 = vld [vmem:[%s7 + $0x70] sm:$0xf]
          %v1241 = vld [vmem:[%s7 + $0x74] sm:$0xf]
          %v1242 = vld [vmem:[%s7 + $0x78] sm:$0xf]
          %v1243 = vld [vmem:[%s7 + $0x7c] sm:$0xf]
          %v1244 = vld [vmem:[%s8] sm:$0x1]
          %v1246 = vlaneseq
          %v1247 = vshrl.u32 %v1246, 7
          %v1248 = vsub.s32 0, %v1247
          %v1249 = vrot.slane %v1244, %v1248
          %v1283 = vunpack.c.l.b16 %v1212
          %v1284 = vunpack.c.l.b16 %v1213
          %v1285 = vunpack.c.l.b16 %v1214
          %v1286 = vunpack.c.l.b16 %v1215
          %v1287 = vunpack.c.l.b16 %v1216
          %v1288 = vunpack.c.l.b16 %v1217
          %v1289 = vunpack.c.l.b16 %v1218
          %v1290 = vunpack.c.l.b16 %v1219
          %v1291 = vunpack.c.l.b16 %v1220
          %v1292 = vunpack.c.l.b16 %v1221
          %v1293 = vunpack.c.l.b16 %v1222
          %v1294 = vunpack.c.l.b16 %v1223
          %v1295 = vunpack.c.l.b16 %v1224
          %v1296 = vunpack.c.l.b16 %v1225
          %v1297 = vunpack.c.l.b16 %v1226
          %v1298 = vunpack.c.l.b16 %v1227
          %v1299 = vunpack.c.l.b16 %v1228
          %v1300 = vunpack.c.l.b16 %v1229
          %v1301 = vunpack.c.l.b16 %v1230
          %v1302 = vunpack.c.l.b16 %v1231
          %v1303 = vunpack.c.l.b16 %v1232
          %v1304 = vunpack.c.l.b16 %v1233
          %v1305 = vunpack.c.l.b16 %v1234
          %v1306 = vunpack.c.l.b16 %v1235
          %v1307 = vunpack.c.l.b16 %v1236
          %v1308 = vunpack.c.l.b16 %v1237
          %v1309 = vunpack.c.l.b16 %v1238
          %v1310 = vunpack.c.l.b16 %v1239
          %v1311 = vunpack.c.l.b16 %v1240
          %v1312 = vunpack.c.l.b16 %v1241
          %v1313 = vunpack.c.l.b16 %v1242
          %v1314 = vunpack.c.l.b16 %v1243
          %v1315 = vpack.c.b16 %v1284, %v1283
          %v1316 = vpack.c.b16 %v1286, %v1285
          %v1317 = vpack.c.b16 %v1288, %v1287
          %v1318 = vpack.c.b16 %v1290, %v1289
          %v1319 = vpack.c.b16 %v1292, %v1291
          %v1320 = vpack.c.b16 %v1294, %v1293
          %v1321 = vpack.c.b16 %v1296, %v1295
          %v1322 = vpack.c.b16 %v1298, %v1297
          %v1323 = vpack.c.b16 %v1300, %v1299
          %v1324 = vpack.c.b16 %v1302, %v1301
          %v1325 = vpack.c.b16 %v1304, %v1303
          %v1326 = vpack.c.b16 %v1306, %v1305
          %v1327 = vpack.c.b16 %v1308, %v1307
          %v1328 = vpack.c.b16 %v1310, %v1309
          %v1329 = vpack.c.b16 %v1312, %v1311
          %v1330 = vpack.c.b16 %v1314, %v1313
          %1347 = vmatprep.subr.bf16.mxu0 0
          %1348 = vmatpush1.bf16.msra.mxu0 %v1315
          %1349 = vmatprep.subr.bf16.mxu0 0
          %1350 = vmatpush1.bf16.msra.mxu0 %v1316
          %1351 = vmatprep.subr.bf16.mxu0 0
          %1352 = vmatpush1.bf16.msra.mxu0 %v1317
          %1353 = vmatprep.subr.bf16.mxu0 0
          %1354 = vmatpush1.bf16.msra.mxu0 %v1318
          %1355 = vmatprep.subr.bf16.mxu0 0
          %1356 = vmatpush1.bf16.msra.mxu0 %v1319
          %1357 = vmatprep.subr.bf16.mxu0 0
          %1358 = vmatpush1.bf16.msra.mxu0 %v1320
          %1359 = vmatprep.subr.bf16.mxu0 0
          %1360 = vmatpush1.bf16.msra.mxu0 %v1321
          %1361 = vmatprep.subr.bf16.mxu0 0
          %1362 = vmatpush1.bf16.msra.mxu0 %v1322
          %1363 = vmatprep.subr.bf16.mxu0 0
          %1364 = vmatpush1.bf16.msra.mxu0 %v1323
          %1365 = vmatprep.subr.bf16.mxu0 0
          %1366 = vmatpush1.bf16.msra.mxu0 %v1324
          %1367 = vmatprep.subr.bf16.mxu0 0
          %1368 = vmatpush1.bf16.msra.mxu0 %v1325
          %1369 = vmatprep.subr.bf16.mxu0 0
          %1370 = vmatpush1.bf16.msra.mxu0 %v1326
          %1371 = vmatprep.subr.bf16.mxu0 0
          %1372 = vmatpush1.bf16.msra.mxu0 %v1327
          %1373 = vmatprep.subr.bf16.mxu0 0
          %1374 = vmatpush1.bf16.msra.mxu0 %v1328
          %1375 = vmatprep.subr.bf16.mxu0 0
          %1376 = vmatpush1.bf16.msra.mxu0 %v1329
          %1377 = vmatprep.subr.bf16.mxu0 0
          %1378 = vmatpush1.bf16.msra.mxu0 %v1330
          %1379 = vmatprep.mubr.bf16.mxu0 %v1211
          %1380 = vmatmul.mubr.bf16.gmra.mrb[0].mxu0 %v1210
          %v1381 = vpop.f32.mrb[0].mxu0
          %v1382 = vadd.f32 %v1249, %v1381
          %v1383 = vpop.f32.mrb[0].mxu0
          %v1384 = vpop.f32.mrb[0].mxu0
          %v1385 = vadd.f32 %v1249, %v1384
          %v1386 = vpop.f32.mrb[0].mxu0
          %1387 = vdwg.mxu0
          %vm1388 = vcmask 64512
          %1389 = vst.msk [vmem:[%s419] sm:$0xff] %vm1388, %v1382
          %1390 = vst.msk [vmem:[%s419 + $0x8] sm:$0xff] %vm1388, %v1385
        $region76: #{tpu_custom_call.1} parent=55 // pred_fallthru
          _
        %s1391 = smul.u32 2, %s26
        %p1392 = scmp.lt.s32.totalorder %s1391, 7
        %s1393 = scalar_select %p1392, %s1391, 7
        %s1394 = smul.addr %s1393, 8
        %s1395 = scalar_lea.vmem %s9, %s1394
        // Predicated region
        $region77: #{tpu_custom_call.1} parent=55 // pred_check
          %p1396 = pneg %p253
        $region78: #{tpu_custom_call.1} parent=55 // pred_check_branch
          %1398 = sbr.rel (%p1396) target = $region80
        $region79: #{tpu_custom_call.1} parent=55 // pred_region
          %s1399 = smul.u32 2, %s26
        $region80: #{tpu_custom_call.1} parent=55 // pred_fallthru
          _
      $region56: #{tpu_custom_call.1} parent=5 // pred_fallthru
        _
      %p1400 = scmp.le.s32.totalorder 2, %s17
      // Predicated region
      $region81: #{tpu_custom_call.1} parent=5 // pred_check
        %p1401 = pneg %p1400
      $region82: #{tpu_custom_call.1} parent=5 // pred_check_branch
        %1403 = sbr.rel (%p1401) target = $region84
      $region83: #{tpu_custom_call.1} parent=5 // pred_region
        %s1404 = ssub.s32 %s17, 2
        // Predicated region
        $region85: #{tpu_custom_call.1} parent=83 // pred_check
          %p1405 = pneg %p259
        $region86: #{tpu_custom_call.1} parent=83 // pred_check_branch
          %1407 = sbr.rel (%p1405) target = $region88
        $region87: #{tpu_custom_call.1} parent=83 // pred_region
          %s1408 = smul.u32 2, %s28
          %p1409 = scmp.lt.s32.totalorder %s1408, 7
          %s1410 = scalar_select %p1409, %s1408, 7
          %s1411 = smul.addr %s1410, 8
          %s1412 = scalar_lea.vmem %s9, %s1411
        $region88: #{tpu_custom_call.1} parent=83 // pred_fallthru
          _
      $region84: #{tpu_custom_call.1} parent=5 // pred_fallthru
        _
    $region6: #{tpu_custom_call.1} parent=1 // loop_footer
      %s21 = sadd.s32 1, %s17
    $region7: #{tpu_custom_call.1} parent=1 // loop_footer_branch
      %16 = sbr.rel target = $region3
    $region8: #{tpu_custom_call.1} parent=1 // loop_exit
      _
    %1413 = vsyncpa [#allocation4], 1
    %s1414 = scalar_lea.sflag [#allocation4], 1
    %1415 = vsyncpa %s1414, 1
    %1416 = vsyncpa [#allocation6], 1

</llo_original>
